<compile_context>
chip_gen: v5e
topology: v5e:2x2
jax: 0.10.0
libtpu: 0.0.40
codegen_flags: <defaults>
</compile_context>

<pallas_src>
import functools

import jax
import jax.numpy as jnp
from jax import lax
from jax.experimental import pallas as pl
from jax.experimental.pallas import tpu as pltpu

EPS = 1e-5
# Must stay below v7x's 64 MiB per-TensorCore VMEM (headroom on v5e/v6e too).
VMEM_LIMIT = 48 * 1024 * 1024


def _round_up(x, m):
    return (x + m - 1) // m * m


# --------------------------------------------------------------------------
# Per-tile centered BN statistics (Chan / parallel-variance partials).
# Row 0: per-channel sum over the REAL rows of the tile (pad rows are zero).
# Row 1: per-channel sum of squared deviations from the TILE mean, with the
#        contribution of zero-padded rows removed.
# Rows 2..7: zero (sublane padding to the f32 (8,128) tile).
# --------------------------------------------------------------------------
def _tile_stats(acc_f32, tile_idx, tm, m_rows):
    n_t = jnp.minimum(m_rows - tile_idx * tm, tm).astype(jnp.float32)
    s = jnp.sum(acc_f32, axis=0, keepdims=True)
    mean_t = s / n_t
    q = jnp.sum((acc_f32 - mean_t) ** 2, axis=0, keepdims=True)
    q = q - (tm - n_t) * mean_t * mean_t        # remove zero-pad rows' (0-m)^2
    pad = jnp.zeros((6, acc_f32.shape[1]), jnp.float32)
    return jnp.concatenate([s, q, pad], axis=0)[None]


# --------------------------------------------------------------------------
# Kernel 1a: conv-as-GEMM, single K tile (no accumulator scratch needed).
# bf16 operands, f32 MXU accumulation, bf16 output + f32 stats partials.
# --------------------------------------------------------------------------
def _conv_mm_1k_kernel(x_ref, w_ref, o_ref, stats_ref, *, tm, m_rows):
    acc = jnp.dot(x_ref[...], w_ref[...], preferred_element_type=jnp.float32)
    o_ref[...] = acc.astype(o_ref.dtype)
    stats_ref[...] = _tile_stats(acc, pl.program_id(0), tm, m_rows)


# --------------------------------------------------------------------------
# Kernel 1b: conv-as-GEMM, K-tiled with f32 VMEM accumulator.  Weights are
# VMEM-resident (constant block index) and sliced along K inside the kernel.
# --------------------------------------------------------------------------
def _conv_mm_kernel(x_ref, w_ref, o_ref, stats_ref, acc_ref, *, tm, tk, m_rows):
    k = pl.program_id(1)

    @pl.when(k == 0)
    def _init():
        acc_ref[...] = jnp.zeros_like(acc_ref)

    kk = pl.multiple_of(k * tk, 128)
    acc_ref[...] += jnp.dot(x_ref[...], w_ref[pl.ds(kk, tk), :],
                            preferred_element_type=jnp.float32)

    @pl.when(k == pl.num_programs(1) - 1)
    def _finalize():
        acc = acc_ref[...]
        o_ref[...] = acc.astype(o_ref.dtype)
        stats_ref[...] = _tile_stats(acc, pl.program_id(0), tm, m_rows)


def conv_matmul_stats(patches, weights, *, tm, tk, m_rows):
    """patches:(Mp,Kp) bf16, weights:(Kp,Cp) bf16 ->
    (y:(Mp,Cp) bf16, stats:(Mp//tm, 8, Cp) f32)."""
    Mp, Kp = patches.shape
    _, Cp = weights.shape
    n_mt = Mp // tm
    nk = Kp // tk
    out_shapes = (jax.ShapeDtypeStruct((Mp, Cp), jnp.bfloat16),
                  jax.ShapeDtypeStruct((n_mt, 8, Cp), jnp.float32))

    if nk == 1:
        kern = functools.partial(_conv_mm_1k_kernel, tm=tm, m_rows=m_rows)
        return pl.pallas_call(
            kern,
            out_shape=out_shapes,
            grid=(n_mt,),
            in_specs=[pl.BlockSpec((tm, Kp), lambda i: (i, 0)),
                      pl.BlockSpec((Kp, Cp), lambda i: (0, 0))],   # resident
            out_specs=(pl.BlockSpec((tm, Cp), lambda i: (i, 0)),
                       pl.BlockSpec((1, 8, Cp), lambda i: (i, 0, 0))),
            compiler_params=pltpu.CompilerParams(
                dimension_semantics=("parallel",),
                vmem_limit_bytes=VMEM_LIMIT),
        )(patches, weights)

    kern = functools.partial(_conv_mm_kernel, tm=tm, tk=tk, m_rows=m_rows)
    return pl.pallas_call(
        kern,
        out_shape=out_shapes,
        grid=(n_mt, nk),
        in_specs=[pl.BlockSpec((tm, tk), lambda i, k: (i, k)),
                  pl.BlockSpec((Kp, Cp), lambda i, k: (0, 0))],    # resident
        out_specs=(pl.BlockSpec((tm, Cp), lambda i, k: (i, 0)),
                   pl.BlockSpec((1, 8, Cp), lambda i, k: (i, 0, 0))),
        scratch_shapes=[pltpu.VMEM((tm, Cp), jnp.float32)],
        compiler_params=pltpu.CompilerParams(
            dimension_semantics=("parallel", "arbitrary"),
            vmem_limit_bytes=VMEM_LIMIT),
    )(patches, weights)


# --------------------------------------------------------------------------
# Kernel 2: tiled normalize (scale/shift) + activation.  bf16 in, f32 out.
# --------------------------------------------------------------------------
def _bn_act_kernel(y_ref, scale_ref, shift_ref, alpha_ref, o_ref, *, act):
    yn = y_ref[...].astype(jnp.float32) * scale_ref[...] + shift_ref[...]
    if act == "relu":
        o_ref[...] = jnp.maximum(yn, 0.0)
    elif act == "prelu":
        o_ref[...] = jnp.where(yn >= 0.0, yn, alpha_ref[...] * yn)
    elif act == "elu":
        o_ref[...] = jnp.where(yn >= 0.0, yn,
                               alpha_ref[...] * (jnp.exp(yn) - 1.0))
    else:
        raise ValueError(f"unsupported activation: {act}")


def bn_act(y_bf16, scale, shift, alpha, *, act, tm):
    Mp, Cp = y_bf16.shape
    kern = functools.partial(_bn_act_kernel, act=act)
    return pl.pallas_call(
        kern,
        out_shape=jax.ShapeDtypeStruct((Mp, Cp), jnp.float32),
        grid=(Mp // tm,),
        in_specs=[pl.BlockSpec((tm, Cp), lambda i: (i, 0)),
                  pl.BlockSpec((1, Cp), lambda i: (0, 0)),
                  pl.BlockSpec((1, Cp), lambda i: (0, 0)),
                  pl.BlockSpec((1, Cp), lambda i: (0, 0))],
        out_specs=pl.BlockSpec((tm, Cp), lambda i: (i, 0)),
        compiler_params=pltpu.CompilerParams(
            dimension_semantics=("parallel",),
            vmem_limit_bytes=VMEM_LIMIT),
    )(y_bf16, scale, shift, alpha)


# --------------------------------------------------------------------------
# Plain-JAX glue
# --------------------------------------------------------------------------
def _im2col(x_ndhwc):
    """(N,D,H,W,C) bf16 -> (N*D*H*W, 27*C) bf16; column order (kd, kh, kw, c)."""
    N, D, H, W, C = x_ndhwc.shape
    xp = jnp.pad(x_ndhwc, ((0, 0), (1, 1), (1, 1), (1, 1), (0, 0)))
    cols = [xp[:, kd:kd + D, kh:kh + H, kw:kw + W, :]
            for kd in range(3) for kh in range(3) for kw in range(3)]
    return jnp.concatenate(cols, axis=-1).reshape(N * D * H * W, 27 * C)


def lu_conv_forward(params, x_ncdhw, *, act="relu"):
    """LUConv forward: act(ContBatchNorm3d(Conv3d(x, k=3, pad=1)))."""
    w = params["w"]                      # (3,3,3,Cin,Cout)
    gamma, beta = params["gamma"], params["beta"]
    N, Cin, D, H, W = x_ncdhw.shape
    Cout = w.shape[-1]

    # bf16 BEFORE im2col: halves the HBM traffic of the patches slab.
    x = jnp.transpose(x_ncdhw, (0, 2, 3, 4, 1)).astype(jnp.bfloat16)
    M = N * D * H * W
    K = 27 * Cin
    Cp = _round_up(Cout, 128)            # lane-dense output channels

    # --- tile selection ---------------------------------------------------
    tm = 512                             # GEMM M tile (multiple of 256)
    Kp = _round_up(K, 128)               # no K inflation beyond 128
    tk = next(c for c in (512, 384, 256, 128) if Kp % c == 0)  # divides Kp
    Mp = _round_up(M, tm)

    # --- conv as GEMM: bf16 operands, f32 accumulation, fused BN stats ----
    patches = _im2col(x)                                       # bf16
    patches = jnp.pad(patches, ((0, Mp - M), (0, Kp - K)))
    wmat = jnp.pad(w.reshape(K, Cout),
                   ((0, Kp - K), (0, Cp - Cout))).astype(jnp.bfloat16)
    # NOTE: Conv3d bias intentionally NOT added — ContBatchNorm3d always
    # subtracts the batch mean, so a per-channel bias cancels exactly.
    y, stats = conv_matmul_stats(patches, wmat, tm=tm, tk=tk, m_rows=M)

    # --- combine per-tile centered stats (Chan parallel variance) ---------
    n_mt = Mp // tm
    s_t = stats[:, 0, :]                                        # (n_mt, Cp)
    q_t = stats[:, 1, :]
    n_t = jnp.minimum(M - jnp.arange(n_mt) * tm, tm).astype(jnp.float32)[:, None]
    mean_t = s_t / n_t
    mean = jnp.sum(s_t, axis=0) / float(M)
    ssd = jnp.sum(q_t + n_t * (mean_t - mean[None, :]) ** 2, axis=0)
    var = jnp.maximum(ssd / float(M), 0.0)                      # biased, >= 0
    inv = lax.rsqrt(var + EPS)

    gamma_p = jnp.pad(gamma, (0, Cp - Cout))
    beta_p = jnp.pad(beta, (0, Cp - Cout))
    scale = (gamma_p * inv).reshape(1, Cp)
    shift = (beta_p - mean * gamma_p * inv).reshape(1, Cp)

    if act == "prelu":
        alpha_p = jnp.pad(params["alpha"], (0, Cp - Cout)).reshape(1, Cp)
    elif act == "elu":
        alpha_p = jnp.full((1, Cp), 1.0, jnp.float32)
    else:
        alpha_p = jnp.zeros((1, Cp), jnp.float32)

    # --- normalize + activation (larger tiles; decoupled from GEMM tm) ----
    tm_bn = next(t for t in (2048, 1024, 512) if Mp % t == 0)
    out = bn_act(y, scale, shift, alpha_p, act=act, tm=tm_bn)   # (Mp, Cp) f32

    out = out[:M, :Cout].reshape(N, D, H, W, Cout)
    return jnp.transpose(out, (0, 4, 1, 2, 3))                  # NCDHW


# --------------------------------------------------------------------------
# Reference (plain JAX/XLA, f32, bias included) — used only for verification.
# --------------------------------------------------------------------------
def lu_conv_reference(params, x_ncdhw, *, act="relu"):
    x = jnp.transpose(x_ncdhw, (0, 2, 3, 4, 1)).astype(jnp.float32)
    y = lax.conv_general_dilated(
        x, params["w"], window_strides=(1, 1, 1),
        padding=[(1, 1)] * 3,
        dimension_numbers=("NDHWC", "DHWIO", "NDHWC"),
        precision=lax.Precision.HIGHEST)
    y = y + params["b"]
    mean = jnp.mean(y, axis=(0, 1, 2, 3))
    var = jnp.mean((y - mean) ** 2, axis=(0, 1, 2, 3))
    yn = (y - mean) * lax.rsqrt(var + EPS) * params["gamma"] + params["beta"]
    if act == "relu":
        out = jnp.maximum(yn, 0.0)
    elif act == "prelu":
        out = jnp.where(yn >= 0.0, yn, params["alpha"] * yn)
    elif act == "elu":
        out = jnp.where(yn >= 0.0, yn, jnp.exp(yn) - 1.0)
    else:
        raise ValueError(act)
    return jnp.transpose(out, (0, 4, 1, 2, 3))


def init_luconv_params(key, in_chan, out_chan, act="relu"):
    k1, k2, k3, k4 = jax.random.split(key, 4)
    params = {
        "w": jax.random.normal(k1, (3, 3, 3, in_chan, out_chan),
                               jnp.float32) * 0.05,
        "b": jax.random.normal(k2, (out_chan,), jnp.float32) * 0.05,
        "gamma": 1.0 + 0.1 * jax.random.normal(k3, (out_chan,), jnp.float32),
        "beta": 0.1 * jax.random.normal(k4, (out_chan,), jnp.float32),
    }
    if act == "prelu":
        params["alpha"] = jnp.full((out_chan,), 0.25, jnp.float32)
    return params


if __name__ == "__main__":
    key = jax.random.PRNGKey(0)
    k_p, k_x = jax.random.split(key)

    in_chan, out_chan, act = 4, 32, "relu"
    params = init_luconv_params(k_p, in_chan, out_chan, act=act)
    x = jax.random.normal(k_x, (2, in_chan, 16, 16, 16), jnp.float32)

    fwd = jax.jit(functools.partial(lu_conv_forward, act=act))
    out = fwd(params, x)
    jax.block_until_ready(out)

    assert out.shape == (2, out_chan, 16, 16, 16)
    assert bool(jnp.all(jnp.isfinite(out)))

    ref = lu_conv_reference(params, x, act=act)
    err = float(jnp.max(jnp.abs(out - ref)))
    assert err < 0.1, f"max abs error vs reference = {err}"

    print("KERNEL_OK")
</pallas_src>

<mosaic_0001>
module attributes {stable_mosaic.version = 11 : i64} {
  func.func @_conv_mm_1k_kernel(%arg0: i32, %arg1: memref<512x128xbf16, #tpu.memory_space<vmem>>, %arg2: memref<128x128xbf16, #tpu.memory_space<vmem>>, %arg3: memref<512x128xbf16, #tpu.memory_space<vmem>>, %arg4: memref<1x8x128xf32, #tpu.memory_space<vmem>>) attributes {dimension_semantics = [#tpu.dimension_semantics<parallel>], iteration_bounds = array<i64: 16>, scalar_prefetch = 0 : i64, scratch_operands = 0 : i64, tpu.core_type = #tpu.core_type<tc>, window_params = [{transform_indices = @transform_0, window_bounds = array<i64: 512, 128>}, {pipeline_mode = #tpu.pipeline_mode<synchronous>, transform_indices = @transform_1, window_bounds = array<i64: 128, 128>}, {transform_indices = @transform_2, window_bounds = array<i64: 512, 128>}, {transform_indices = @transform_3, window_bounds = array<i64: 1, 8, 128>}]} {
    %c0 = arith.constant 0 : index
    %c0_0 = arith.constant 0 : index
    %0 = vector.load %arg1[%c0, %c0_0] : memref<512x128xbf16, #tpu.memory_space<vmem>>, vector<512x128xbf16>
    %c0_1 = arith.constant 0 : index
    %c0_2 = arith.constant 0 : index
    %1 = vector.load %arg2[%c0_1, %c0_2] : memref<128x128xbf16, #tpu.memory_space<vmem>>, vector<128x128xbf16>
    %cst = arith.constant dense<0.000000e+00> : vector<512x128xf32>
    %2 = tpu.matmul %0, %1, %cst {dimension_numbers = #tpu.dot_dimension_numbers<[1], [0], [0], [1], [0, 0, 1, 1], [], []>} : vector<512x128xbf16>, vector<128x128xbf16>, vector<512x128xf32> -> vector<512x128xf32>
    %3 = arith.truncf %2 : vector<512x128xf32> to vector<512x128xbf16>
    %c0_3 = arith.constant 0 : index
    %c0_4 = arith.constant 0 : index
    %4 = vector.load %arg3[%c0_3, %c0_4] : memref<512x128xbf16, #tpu.memory_space<vmem>>, vector<512x128xbf16>
    tpu.vector_store %arg3[%c0_3, %c0_4], %3 {strides = array<i32>} : memref<512x128xbf16, #tpu.memory_space<vmem>>, vector<512x128xbf16>,
    %c512_i32 = arith.constant 512 : i32
    %5 = arith.muli %arg0, %c512_i32 : i32
    %c8192_i32 = arith.constant 8192 : i32
    %6 = arith.subi %c8192_i32, %5 : i32
    %c512_i32_5 = arith.constant 512 : i32
    %7 = arith.minsi %6, %c512_i32_5 : i32
    %8 = arith.sitofp %7 : i32 to f32
    %cst_6 = arith.constant dense<0.000000e+00> : vector<128xf32>
    %9 = vector.multi_reduction <add>, %2, %cst_6 [0] : vector<512x128xf32> to vector<128xf32>
    %10 = vector.shape_cast %9 : vector<128xf32> to vector<1x128xf32>
    %11 = vector.broadcast %8 : f32 to vector<1x128xf32>
    %12 = arith.divf %10, %11 : vector<1x128xf32>
    %13 = vector.broadcast %12 : vector<1x128xf32> to vector<512x128xf32>
    %14 = arith.subf %2, %13 : vector<512x128xf32>
    %15 = arith.mulf %14, %14 : vector<512x128xf32>
    %cst_7 = arith.constant dense<0.000000e+00> : vector<128xf32>
    %16 = vector.multi_reduction <add>, %15, %cst_7 [0] : vector<512x128xf32> to vector<128xf32>
    %17 = vector.shape_cast %16 : vector<128xf32> to vector<1x128xf32>
    %cst_8 = arith.constant 5.120000e+02 : f32
    %18 = arith.subf %cst_8, %8 : f32
    %19 = vector.broadcast %18 : f32 to vector<1x128xf32>
    %20 = arith.mulf %19, %12 : vector<1x128xf32>
    %21 = arith.mulf %20, %12 : vector<1x128xf32>
    %22 = arith.subf %17, %21 : vector<1x128xf32>
    %cst_9 = arith.constant 0.000000e+00 : f32
    %23 = vector.broadcast %cst_9 : f32 to vector<6x128xf32>
    %24 = tpu.concatenate %10, %22, %23 in 0 : vector<1x128xf32>, vector<1x128xf32>, vector<6x128xf32> -> vector<8x128xf32>
    %25 = vector.shape_cast %24 : vector<8x128xf32> to vector<1x8x128xf32>
    %c0_10 = arith.constant 0 : index
    %c0_11 = arith.constant 0 : index
    %c0_12 = arith.constant 0 : index
    %26 = vector.load %arg4[%c0_10, %c0_11, %c0_12] : memref<1x8x128xf32, #tpu.memory_space<vmem>>, vector<1x8x128xf32>
    tpu.vector_store %arg4[%c0_10, %c0_11, %c0_12], %25 {strides = array<i32>} : memref<1x8x128xf32, #tpu.memory_space<vmem>>, vector<1x8x128xf32>,
    return
  }
  func.func @transform_0(%arg0: i32) -> (i32, i32) {
    %c0_i32 = arith.constant 0 : i32
    %c0_i32_0 = arith.constant 0 : i32
    return %arg0, %c0_i32 : i32, i32
  }
  func.func @transform_1(%arg0: i32) -> (i32, i32) {
    %c0_i32 = arith.constant 0 : i32
    %c0_i32_0 = arith.constant 0 : i32
    %c0_i32_1 = arith.constant 0 : i32
    return %c0_i32, %c0_i32_0 : i32, i32
  }
  func.func @transform_2(%arg0: i32) -> (i32, i32) {
    %c0_i32 = arith.constant 0 : i32
    %c0_i32_0 = arith.constant 0 : i32
    return %arg0, %c0_i32 : i32, i32
  }
  func.func @transform_3(%arg0: i32) -> (i32, i32, i32) {
    %c0_i32 = arith.constant 0 : i32
    %c0_i32_0 = arith.constant 0 : i32
    %c0_i32_1 = arith.constant 0 : i32
    return %arg0, %c0_i32, %c0_i32_0 : i32, i32, i32
  }
}

module attributes {stable_mosaic.version = 11 : i64} {
  func.func @_bn_act_kernel(%arg0: i32, %arg1: memref<2048x128xbf16, #tpu.memory_space<vmem>>, %arg2: memref<1x128xf32, #tpu.memory_space<vmem>>, %arg3: memref<1x128xf32, #tpu.memory_space<vmem>>, %arg4: memref<1x128xf32, #tpu.memory_space<vmem>>, %arg5: memref<2048x128xf32, #tpu.memory_space<vmem>>) attributes {dimension_semantics = [#tpu.dimension_semantics<parallel>], iteration_bounds = array<i64: 4>, scalar_prefetch = 0 : i64, scratch_operands = 0 : i64, tpu.core_type = #tpu.core_type<tc>, window_params = [{transform_indices = @transform_0, window_bounds = array<i64: 2048, 128>}, {pipeline_mode = #tpu.pipeline_mode<synchronous>, transform_indices = @transform_1, window_bounds = array<i64: 1, 128>}, {pipeline_mode = #tpu.pipeline_mode<synchronous>, transform_indices = @transform_2, window_bounds = array<i64: 1, 128>}, {pipeline_mode = #tpu.pipeline_mode<synchronous>, transform_indices = @transform_3, window_bounds = array<i64: 1, 128>}, {transform_indices = @transform_4, window_bounds = array<i64: 2048, 128>}]} {
    %c0 = arith.constant 0 : index
    %c0_0 = arith.constant 0 : index
    %0 = vector.load %arg1[%c0, %c0_0] : memref<2048x128xbf16, #tpu.memory_space<vmem>>, vector<2048x128xbf16>
    %1 = arith.extf %0 : vector<2048x128xbf16> to vector<2048x128xf32>
    %c0_1 = arith.constant 0 : index
    %c0_2 = arith.constant 0 : index
    %2 = vector.load %arg2[%c0_1, %c0_2] : memref<1x128xf32, #tpu.memory_space<vmem>>, vector<1x128xf32>
    %3 = vector.broadcast %2 : vector<1x128xf32> to vector<2048x128xf32>
    %4 = arith.mulf %1, %3 : vector<2048x128xf32>
    %c0_3 = arith.constant 0 : index
    %c0_4 = arith.constant 0 : index
    %5 = vector.load %arg3[%c0_3, %c0_4] : memref<1x128xf32, #tpu.memory_space<vmem>>, vector<1x128xf32>
    %6 = vector.broadcast %5 : vector<1x128xf32> to vector<2048x128xf32>
    %7 = arith.addf %4, %6 : vector<2048x128xf32>
    %cst = arith.constant 0.000000e+00 : f32
    %8 = vector.broadcast %cst : f32 to vector<2048x128xf32>
    %9 = arith.maximumf %7, %8 : vector<2048x128xf32>
    %c0_5 = arith.constant 0 : index
    %c0_6 = arith.constant 0 : index
    %10 = vector.load %arg5[%c0_5, %c0_6] : memref<2048x128xf32, #tpu.memory_space<vmem>>, vector<2048x128xf32>
    tpu.vector_store %arg5[%c0_5, %c0_6], %9 {strides = array<i32>} : memref<2048x128xf32, #tpu.memory_space<vmem>>, vector<2048x128xf32>,
    return
  }
  func.func @transform_0(%arg0: i32) -> (i32, i32) {
    %c0_i32 = arith.constant 0 : i32
    %c0_i32_0 = arith.constant 0 : i32
    return %arg0, %c0_i32 : i32, i32
  }
  func.func @transform_1(%arg0: i32) -> (i32, i32) {
    %c0_i32 = arith.constant 0 : i32
    %c0_i32_0 = arith.constant 0 : i32
    %c0_i32_1 = arith.constant 0 : i32
    return %c0_i32, %c0_i32_0 : i32, i32
  }
  func.func @transform_2(%arg0: i32) -> (i32, i32) {
    %c0_i32 = arith.constant 0 : i32
    %c0_i32_0 = arith.constant 0 : i32
    %c0_i32_1 = arith.constant 0 : i32
    return %c0_i32, %c0_i32_0 : i32, i32
  }
  func.func @transform_3(%arg0: i32) -> (i32, i32) {
    %c0_i32 = arith.constant 0 : i32
    %c0_i32_0 = arith.constant 0 : i32
    %c0_i32_1 = arith.constant 0 : i32
    return %c0_i32, %c0_i32_0 : i32, i32
  }
  func.func @transform_4(%arg0: i32) -> (i32, i32) {
    %c0_i32 = arith.constant 0 : i32
    %c0_i32_0 = arith.constant 0 : i32
    return %arg0, %c0_i32 : i32, i32
  }
}

</mosaic_0001>

<llo_original>
// kernel: lu_conv_forward.2
$region0: #{lu_conv_forward.2}
  #allocation0 [shape = 'u32[]', space=smem, size = 0x4, offset = 0x4, fixed_abs, tag = 'smem constant byte address 0x4 - core index']
  #allocation1 [shape = 'u32[72,128]{1,0:T(1,128)}', space=vmem, size = 0x9000, scoped, tag = 'internal scratch']
  %s0 = inlined_call_operand.vmem [shape: bf16[8192,128], index: 0, kind: input, shape index: {}]
  %s1 = inlined_call_operand.vmem [shape: bf16[128,128], index: 1, kind: input, shape index: {}]
  %s2 = inlined_call_operand.vmem [shape: bf16[8192,128], index: 2, kind: output, shape index: {0}]
  %s3 = inlined_call_operand.vmem [shape: f32[16,8,128], index: 3, kind: output, shape index: {1}]
  %4 = xla_tuple %s2, %s3
  %s5 = sld [smem:[#allocation0]]
  $region49: #{lu_conv_forward.2} parent=0
    _
  %s7 = ssub.s32 1, %s5
  %s8 = scalar_select 0, %s7, %s5
  loop: start=0, step=1, limit=18
  $region2: #{lu_conv_forward.2} parent=0 // loop_pre_header
    _
  $region3: #{lu_conv_forward.2} parent=0 // loop_header
    %s10 = sphi 0, %s14
    %p11 = scmp.ge.s32.totalorder %s10, 18
    %s20 = sphi 0, %s22
    %s23 = sphi 0, %s20
    %s24 = sphi 0, %s23
    %s40 = sphi 0, %s24
    %s44 = sphi 0, %s44
    %s46 = sphi 0, %s44
    %s47 = sphi 0, %s46
    %s61 = sphi 0, %s47
    %s67 = sphi 0, %s69
    %s70 = sphi 0, %s67
    %s71 = sphi 0, %s70
    %s87 = sphi 0, %s71
    %s93 = sphi 0, %s95
    %s96 = sphi 0, %s93
    %s97 = sphi 0, %s96
    %s113 = sphi 0, %s97
  $region4: #{lu_conv_forward.2} parent=0 // loop_header_branch
    %13 = sbr.rel (%p11) target = $region8
  $region5: #{lu_conv_forward.2} parent=0 // loop_body
    %s15 = ssub.s32 %s10, 1
    %s16 = ssub.s32 %s10, 2
    %s17 = sadd.s32 %s10, 1
    %s18 = ssub.s32 %s10, %s17
    %p19 = scmp.eq.s32.totalorder %s18, 0
    %s21 = sadd.s32 %s20, 1
    %s22 = scalar_select %p19, %s20, %s21
    %p25 = pneg %p19
    %p26 = scmp.eq.s32.totalorder %s10, 15
    %p27 = por %p25, %p26
    %p28 = scmp.ne.s32.totalorder %s20, %s23
    %p29 = scmp.eq.s32.totalorder %s10, 0
    %p30 = por %p28, %p29
    %p31 = scmp.ne.s32.totalorder %s20, %s23
    %p32 = scmp.eq.s32.totalorder %s15, 15
    %p33 = por %p31, %p32
    %p34 = scmp.ne.s32.totalorder %s23, %s24
    %p35 = scmp.eq.s32.totalorder %s15, 0
    %p36 = por %p34, %p35
    %p37 = scmp.ne.s32.totalorder %s23, %s24
    %p38 = scmp.eq.s32.totalorder %s16, 15
    %p39 = por %p37, %p38
    %p41 = scmp.ne.s32.totalorder %s24, %s40
    %p42 = scmp.eq.s32.totalorder %s16, 0
    %p43 = por %p41, %p42
    %s45 = sadd.s32 %s44, 1
    %p48 = scmp.eq.s32.totalorder %s10, 15
    %p49 = scmp.ne.s32.totalorder %s44, %s46
    %p50 = scmp.eq.s32.totalorder %s10, 0
    %p51 = por %p49, %p50
    %p52 = scmp.ne.s32.totalorder %s44, %s46
    %p53 = scmp.eq.s32.totalorder %s15, 15
    %p54 = por %p52, %p53
    %p55 = scmp.ne.s32.totalorder %s46, %s47
    %p56 = scmp.eq.s32.totalorder %s15, 0
    %p57 = por %p55, %p56
    %p58 = scmp.ne.s32.totalorder %s46, %s47
    %p59 = scmp.eq.s32.totalorder %s16, 15
    %p60 = por %p58, %p59
    %p62 = scmp.ne.s32.totalorder %s47, %s61
    %p63 = scmp.eq.s32.totalorder %s16, 0
    %p64 = por %p62, %p63
    %s65 = ssub.s32 %s10, %s17
    %p66 = scmp.eq.s32.totalorder %s65, 0
    %s68 = sadd.s32 %s67, 1
    %s69 = scalar_select %p66, %s67, %s68
    %p72 = pneg %p66
    %p73 = scmp.eq.s32.totalorder %s10, 15
    %p74 = por %p72, %p73
    %p75 = scmp.ne.s32.totalorder %s67, %s70
    %p76 = scmp.eq.s32.totalorder %s10, 0
    %p77 = por %p75, %p76
    %p78 = scmp.ne.s32.totalorder %s67, %s70
    %p79 = scmp.eq.s32.totalorder %s15, 15
    %p80 = por %p78, %p79
    %p81 = scmp.ne.s32.totalorder %s70, %s71
    %p82 = scmp.eq.s32.totalorder %s15, 0
    %p83 = por %p81, %p82
    %p84 = scmp.ne.s32.totalorder %s70, %s71
    %p85 = scmp.eq.s32.totalorder %s16, 15
    %p86 = por %p84, %p85
    %p88 = scmp.ne.s32.totalorder %s71, %s87
    %p89 = scmp.eq.s32.totalorder %s16, 0
    %p90 = por %p88, %p89
    %s91 = ssub.s32 %s10, %s17
    %p92 = scmp.eq.s32.totalorder %s91, 0
    %s94 = sadd.s32 %s93, 1
    %s95 = scalar_select %p92, %s93, %s94
    %p98 = pneg %p92
    %p99 = scmp.eq.s32.totalorder %s10, 15
    %p100 = por %p98, %p99
    %p101 = scmp.ne.s32.totalorder %s93, %s96
    %p102 = scmp.eq.s32.totalorder %s10, 0
    %p103 = por %p101, %p102
    %p104 = scmp.ne.s32.totalorder %s93, %s96
    %p105 = scmp.eq.s32.totalorder %s15, 15
    %p106 = por %p104, %p105
    %p107 = scmp.ne.s32.totalorder %s96, %s97
    %p108 = scmp.eq.s32.totalorder %s15, 0
    %p109 = por %p107, %p108
    %p110 = scmp.ne.s32.totalorder %s96, %s97
    %p111 = scmp.eq.s32.totalorder %s16, 15
    %p112 = por %p110, %p111
    %p114 = scmp.ne.s32.totalorder %s97, %s113
    %p115 = scmp.eq.s32.totalorder %s16, 0
    %p116 = por %p114, %p115
    %p117 = scmp.le.s32.totalorder 1, %s10
    %p118 = scmp.lt.s32.totalorder %s10, 17
    %p119 = pnand %p117, %p118
    %p120 = pneg %p119
    // Predicated region
    $region9: #{lu_conv_forward.2} parent=5 // pred_check
      _
    $region10: #{lu_conv_forward.2} parent=5 // pred_check_branch
      %122 = sbr.rel (%p119) target = $region12
    $region11: #{lu_conv_forward.2} parent=5 // pred_region
      %s123 = ssub.s32 %s10, 1
      // Predicated region
      $region13: #{lu_conv_forward.2} parent=11 // pred_check
        %p124 = pneg %p57
      $region14: #{lu_conv_forward.2} parent=11 // pred_check_branch
        %126 = sbr.rel (%p124) target = $region16
      $region15: #{lu_conv_forward.2} parent=11 // pred_region
        _
      $region16: #{lu_conv_forward.2} parent=11 // pred_fallthru
        _
    $region12: #{lu_conv_forward.2} parent=5 // pred_fallthru
      _
    %p127 = scmp.lt.s32.totalorder %s10, 16
    // Predicated region
    $region17: #{lu_conv_forward.2} parent=5 // pred_check
      %p128 = pneg %p127
    $region18: #{lu_conv_forward.2} parent=5 // pred_check_branch
      %130 = sbr.rel (%p128) target = $region20
    $region19: #{lu_conv_forward.2} parent=5 // pred_region
      // Predicated region
      $region21: #{lu_conv_forward.2} parent=19 // pred_check
        %p131 = pneg %p30
      $region22: #{lu_conv_forward.2} parent=19 // pred_check_branch
        %133 = sbr.rel (%p131) target = $region24
      $region23: #{lu_conv_forward.2} parent=19 // pred_region
        %s134 = smul.u32 64, %s10
        %p135 = scmp.lt.s32.totalorder %s134, 1023
        %s136 = scalar_select %p135, %s134, 1023
        %s137 = smul.addr %s136, 4
        %s138 = scalar_lea.vmem %s0, %s137
        %s139 = smul.u32 64, %s10
      $region24: #{lu_conv_forward.2} parent=19 // pred_fallthru
        _
    $region20: #{lu_conv_forward.2} parent=5 // pred_fallthru
      _
    %p140 = scmp.le.s32.totalorder 1, %s10
    %p141 = scmp.lt.s32.totalorder %s10, 17
    %p142 = pnand %p140, %p141
    %p143 = pneg %p142
    // Predicated region
    $region25: #{lu_conv_forward.2} parent=5 // pred_check
      _
    $region26: #{lu_conv_forward.2} parent=5 // pred_check_branch
      %145 = sbr.rel (%p142) target = $region28
    $region27: #{lu_conv_forward.2} parent=5 // pred_region
      %s146 = ssub.s32 %s10, 1
      %s147 = smul.u32 64, %s15
      %p148 = scmp.lt.s32.totalorder %s147, 1023
      %s149 = scalar_select %p148, %s147, 1023
      %s150 = smul.addr %s149, 4
      %s151 = scalar_lea.vmem %s0, %s150
      %p152 = pneg %p36
      %p153 = pneg %p33
      %p154 = pneg %p57
      %p155 = pneg %p54
      %p156 = pneg %p83
      %p157 = pneg %p80
      %s158 = smul.u32 64, %s15
      %p159 = scmp.lt.s32.totalorder %s158, 1023
      %s160 = scalar_select %p159, %s158, 1023
      %s161 = smul.addr %s160, 4
      %s162 = scalar_lea.vmem %s2, %s161
      %p163 = pneg %p109
      %p164 = pneg %p106
      %p165 = scmp.lt.s32.totalorder %s15, 15
      %s166 = scalar_select %p165, %s15, 15
      %s167 = smul.addr %s166, 8
      %s168 = scalar_lea.vmem %s3, %s167
      %s169 = smul.u32 64, %s15
      %p170 = scmp.lt.s32.totalorder %s169, 1023
      %s171 = scalar_select %p170, %s169, 1023
      %s172 = smul.addr %s171, 4
      %s173 = scalar_lea.vmem %s0, %s172
      %s174 = smul.u32 64, %s15
      %s175 = smul.u32 64, %s15
      %p176 = scmp.lt.s32.totalorder %s175, 1023
      %s177 = scalar_select %p176, %s175, 1023
      %s178 = smul.addr %s177, 4
      %s179 = scalar_lea.vmem %s2, %s178
      %s180 = smul.u32 64, %s15
      %p181 = scmp.lt.s32.totalorder %s15, 15
      %s182 = scalar_select %p181, %s15, 15
      %s183 = smul.addr %s182, 8
      %s184 = scalar_lea.vmem %s3, %s183
      %v185 = vld [vmem:[%s173] sm:$0xf]
      %v186 = vld [vmem:[%s173 + $0x4] sm:$0xf]
      %v187 = vld [vmem:[%s173 + $0x8] sm:$0xf]
      %v188 = vld [vmem:[%s173 + $0xc] sm:$0xf]
      %v189 = vld [vmem:[%s173 + $0x10] sm:$0xf]
      %v190 = vld [vmem:[%s173 + $0x14] sm:$0xf]
      %v191 = vld [vmem:[%s173 + $0x18] sm:$0xf]
      %v192 = vld [vmem:[%s173 + $0x1c] sm:$0xf]
      %v193 = vld [vmem:[%s173 + $0x20] sm:$0xf]
      %v194 = vld [vmem:[%s173 + $0x24] sm:$0xf]
      %v195 = vld [vmem:[%s173 + $0x28] sm:$0xf]
      %v196 = vld [vmem:[%s173 + $0x2c] sm:$0xf]
      %v197 = vld [vmem:[%s173 + $0x30] sm:$0xf]
      %v198 = vld [vmem:[%s173 + $0x34] sm:$0xf]
      %v199 = vld [vmem:[%s173 + $0x38] sm:$0xf]
      %v200 = vld [vmem:[%s173 + $0x3c] sm:$0xf]
      %v201 = vld [vmem:[%s173 + $0x40] sm:$0xf]
      %v202 = vld [vmem:[%s173 + $0x44] sm:$0xf]
      %v203 = vld [vmem:[%s173 + $0x48] sm:$0xf]
      %v204 = vld [vmem:[%s173 + $0x4c] sm:$0xf]
      %v205 = vld [vmem:[%s173 + $0x50] sm:$0xf]
      %v206 = vld [vmem:[%s173 + $0x54] sm:$0xf]
      %v207 = vld [vmem:[%s173 + $0x58] sm:$0xf]
      %v208 = vld [vmem:[%s173 + $0x5c] sm:$0xf]
      %v209 = vld [vmem:[%s173 + $0x60] sm:$0xf]
      %v210 = vld [vmem:[%s173 + $0x64] sm:$0xf]
      %v211 = vld [vmem:[%s173 + $0x68] sm:$0xf]
      %v212 = vld [vmem:[%s173 + $0x6c] sm:$0xf]
      %v213 = vld [vmem:[%s173 + $0x70] sm:$0xf]
      %v214 = vld [vmem:[%s173 + $0x74] sm:$0xf]
      %v215 = vld [vmem:[%s173 + $0x78] sm:$0xf]
      %v216 = vld [vmem:[%s173 + $0x7c] sm:$0xf]
      %v217 = vld [vmem:[%s173 + $0x80] sm:$0xf]
      %v218 = vld [vmem:[%s173 + $0x84] sm:$0xf]
      %v219 = vld [vmem:[%s173 + $0x88] sm:$0xf]
      %v220 = vld [vmem:[%s173 + $0x8c] sm:$0xf]
      %v221 = vld [vmem:[%s173 + $0x90] sm:$0xf]
      %v222 = vld [vmem:[%s173 + $0x94] sm:$0xf]
      %v223 = vld [vmem:[%s173 + $0x98] sm:$0xf]
      %v224 = vld [vmem:[%s173 + $0x9c] sm:$0xf]
      %v225 = vld [vmem:[%s173 + $0xa0] sm:$0xf]
      %v226 = vld [vmem:[%s173 + $0xa4] sm:$0xf]
      %v227 = vld [vmem:[%s173 + $0xa8] sm:$0xf]
      %v228 = vld [vmem:[%s173 + $0xac] sm:$0xf]
      %v229 = vld [vmem:[%s173 + $0xb0] sm:$0xf]
      %v230 = vld [vmem:[%s173 + $0xb4] sm:$0xf]
      %v231 = vld [vmem:[%s173 + $0xb8] sm:$0xf]
      %v232 = vld [vmem:[%s173 + $0xbc] sm:$0xf]
      %v233 = vld [vmem:[%s173 + $0xc0] sm:$0xf]
      %v234 = vld [vmem:[%s173 + $0xc4] sm:$0xf]
      %v235 = vld [vmem:[%s173 + $0xc8] sm:$0xf]
      %v236 = vld [vmem:[%s173 + $0xcc] sm:$0xf]
      %v237 = vld [vmem:[%s173 + $0xd0] sm:$0xf]
      %v238 = vld [vmem:[%s173 + $0xd4] sm:$0xf]
      %v239 = vld [vmem:[%s173 + $0xd8] sm:$0xf]
      %v240 = vld [vmem:[%s173 + $0xdc] sm:$0xf]
      %v241 = vld [vmem:[%s173 + $0xe0] sm:$0xf]
      %v242 = vld [vmem:[%s173 + $0xe4] sm:$0xf]
      %v243 = vld [vmem:[%s173 + $0xe8] sm:$0xf]
      %v244 = vld [vmem:[%s173 + $0xec] sm:$0xf]
      %v245 = vld [vmem:[%s173 + $0xf0] sm:$0xf]
      %v246 = vld [vmem:[%s173 + $0xf4] sm:$0xf]
      %v247 = vld [vmem:[%s173 + $0xf8] sm:$0xf]
      %v248 = vld [vmem:[%s173 + $0xfc] sm:$0xf]
      %v249 = vld [vmem:[%s1] sm:$0xf]
      %v250 = vld [vmem:[%s1 + $0x4] sm:$0xf]
      %v251 = vld [vmem:[%s1 + $0x8] sm:$0xf]
      %v252 = vld [vmem:[%s1 + $0xc] sm:$0xf]
      %v253 = vld [vmem:[%s1 + $0x10] sm:$0xf]
      %v254 = vld [vmem:[%s1 + $0x14] sm:$0xf]
      %v255 = vld [vmem:[%s1 + $0x18] sm:$0xf]
      %v256 = vld [vmem:[%s1 + $0x1c] sm:$0xf]
      %v257 = vld [vmem:[%s1 + $0x20] sm:$0xf]
      %v258 = vld [vmem:[%s1 + $0x24] sm:$0xf]
      %v259 = vld [vmem:[%s1 + $0x28] sm:$0xf]
      %v260 = vld [vmem:[%s1 + $0x2c] sm:$0xf]
      %v261 = vld [vmem:[%s1 + $0x30] sm:$0xf]
      %v262 = vld [vmem:[%s1 + $0x34] sm:$0xf]
      %v263 = vld [vmem:[%s1 + $0x38] sm:$0xf]
      %v264 = vld [vmem:[%s1 + $0x3c] sm:$0xf]
      %v329 = vunpack.c.l.b16 %v185
      %v330 = vunpack.c.l.b16 %v186
      %v331 = vunpack.c.l.b16 %v187
      %v332 = vunpack.c.l.b16 %v188
      %v333 = vunpack.c.l.b16 %v189
      %v334 = vunpack.c.l.b16 %v190
      %v335 = vunpack.c.l.b16 %v191
      %v336 = vunpack.c.l.b16 %v192
      %v337 = vunpack.c.l.b16 %v193
      %v338 = vunpack.c.l.b16 %v194
      %v339 = vunpack.c.l.b16 %v195
      %v340 = vunpack.c.l.b16 %v196
      %v341 = vunpack.c.l.b16 %v197
      %v342 = vunpack.c.l.b16 %v198
      %v343 = vunpack.c.l.b16 %v199
      %v344 = vunpack.c.l.b16 %v200
      %v345 = vunpack.c.l.b16 %v201
      %v346 = vunpack.c.l.b16 %v202
      %v347 = vunpack.c.l.b16 %v203
      %v348 = vunpack.c.l.b16 %v204
      %v349 = vunpack.c.l.b16 %v205
      %v350 = vunpack.c.l.b16 %v206
      %v351 = vunpack.c.l.b16 %v207
      %v352 = vunpack.c.l.b16 %v208
      %v353 = vunpack.c.l.b16 %v209
      %v354 = vunpack.c.l.b16 %v210
      %v355 = vunpack.c.l.b16 %v211
      %v356 = vunpack.c.l.b16 %v212
      %v357 = vunpack.c.l.b16 %v213
      %v358 = vunpack.c.l.b16 %v214
      %v359 = vunpack.c.l.b16 %v215
      %v360 = vunpack.c.l.b16 %v216
      %v361 = vunpack.c.l.b16 %v217
      %v362 = vunpack.c.l.b16 %v218
      %v363 = vunpack.c.l.b16 %v219
      %v364 = vunpack.c.l.b16 %v220
      %v365 = vunpack.c.l.b16 %v221
      %v366 = vunpack.c.l.b16 %v222
      %v367 = vunpack.c.l.b16 %v223
      %v368 = vunpack.c.l.b16 %v224
      %v369 = vunpack.c.l.b16 %v225
      %v370 = vunpack.c.l.b16 %v226
      %v371 = vunpack.c.l.b16 %v227
      %v372 = vunpack.c.l.b16 %v228
      %v373 = vunpack.c.l.b16 %v229
      %v374 = vunpack.c.l.b16 %v230
      %v375 = vunpack.c.l.b16 %v231
      %v376 = vunpack.c.l.b16 %v232
      %v377 = vunpack.c.l.b16 %v233
      %v378 = vunpack.c.l.b16 %v234
      %v379 = vunpack.c.l.b16 %v235
      %v380 = vunpack.c.l.b16 %v236
      %v381 = vunpack.c.l.b16 %v237
      %v382 = vunpack.c.l.b16 %v238
      %v383 = vunpack.c.l.b16 %v239
      %v384 = vunpack.c.l.b16 %v240
      %v385 = vunpack.c.l.b16 %v241
      %v386 = vunpack.c.l.b16 %v242
      %v387 = vunpack.c.l.b16 %v243
      %v388 = vunpack.c.l.b16 %v244
      %v389 = vunpack.c.l.b16 %v245
      %v390 = vunpack.c.l.b16 %v246
      %v391 = vunpack.c.l.b16 %v247
      %v392 = vunpack.c.l.b16 %v248
      %v393 = vpack.c.b16 %v330, %v329
      %v394 = vpack.c.b16 %v332, %v331
      %v395 = vpack.c.b16 %v334, %v333
      %v396 = vpack.c.b16 %v336, %v335
      %v397 = vpack.c.b16 %v338, %v337
      %v398 = vpack.c.b16 %v340, %v339
      %v399 = vpack.c.b16 %v342, %v341
      %v400 = vpack.c.b16 %v344, %v343
      %v401 = vpack.c.b16 %v346, %v345
      %v402 = vpack.c.b16 %v348, %v347
      %v403 = vpack.c.b16 %v350, %v349
      %v404 = vpack.c.b16 %v352, %v351
      %v405 = vpack.c.b16 %v354, %v353
      %v406 = vpack.c.b16 %v356, %v355
      %v407 = vpack.c.b16 %v358, %v357
      %v408 = vpack.c.b16 %v360, %v359
      %v409 = vpack.c.b16 %v362, %v361
      %v410 = vpack.c.b16 %v364, %v363
      %v411 = vpack.c.b16 %v366, %v365
      %v412 = vpack.c.b16 %v368, %v367
      %v413 = vpack.c.b16 %v370, %v369
      %v414 = vpack.c.b16 %v372, %v371
      %v415 = vpack.c.b16 %v374, %v373
      %v416 = vpack.c.b16 %v376, %v375
      %v417 = vpack.c.b16 %v378, %v377
      %v418 = vpack.c.b16 %v380, %v379
      %v419 = vpack.c.b16 %v382, %v381
      %v420 = vpack.c.b16 %v384, %v383
      %v421 = vpack.c.b16 %v386, %v385
      %v422 = vpack.c.b16 %v388, %v387
      %v423 = vpack.c.b16 %v390, %v389
      %v424 = vpack.c.b16 %v392, %v391
      %v473 = vunpack.c.l.b16 %v249
      %v474 = vunpack.c.l.b16 %v250
      %v475 = vunpack.c.l.b16 %v251
      %v476 = vunpack.c.l.b16 %v252
      %v477 = vunpack.c.l.b16 %v253
      %v478 = vunpack.c.l.b16 %v254
      %v479 = vunpack.c.l.b16 %v255
      %v480 = vunpack.c.l.b16 %v256
      %v481 = vunpack.c.l.b16 %v257
      %v482 = vunpack.c.l.b16 %v258
      %v483 = vunpack.c.l.b16 %v259
      %v484 = vunpack.c.l.b16 %v260
      %v485 = vunpack.c.l.b16 %v261
      %v486 = vunpack.c.l.b16 %v262
      %v487 = vunpack.c.l.b16 %v263
      %v488 = vunpack.c.l.b16 %v264
      %v489 = vpack.c.b16 %v474, %v473
      %v490 = vpack.c.b16 %v476, %v475
      %v491 = vpack.c.b16 %v478, %v477
      %v492 = vpack.c.b16 %v480, %v479
      %v493 = vpack.c.b16 %v482, %v481
      %v494 = vpack.c.b16 %v484, %v483
      %v495 = vpack.c.b16 %v486, %v485
      %v496 = vpack.c.b16 %v488, %v487
      %505 = vmatpush.bf16.msra.mxu0 %v496
      %506 = vmatpush.bf16.msra.mxu0 %v495
      %507 = vmatpush.bf16.msra.mxu0 %v494
      %508 = vmatpush.bf16.msra.mxu0 %v493
      %509 = vmatpush.bf16.msra.mxu0 %v492
      %510 = vmatpush.bf16.msra.mxu0 %v491
      %511 = vmatpush.bf16.msra.mxu0 %v490
      %512 = vmatpush.bf16.msra.mxu0 %v489
      %513 = vmatmul.bf16.gmra.mxu0 %v393
      %v514 = vpop.f32.mrf.mxu0
      %v515 = vadd.f32 0.0, %v514
      %v516 = vpop.f32.mrf.mxu0
      %v517 = vadd.f32 0.0, %v516
      %518 = vmatmul.bf16.gmra.mxu0 %v394
      %v519 = vpop.f32.mrf.mxu0
      %v520 = vadd.f32 0.0, %v519
      %v521 = vpop.f32.mrf.mxu0
      %v522 = vadd.f32 0.0, %v521
      %523 = vmatmul.bf16.gmra.mxu0 %v395
      %v524 = vpop.f32.mrf.mxu0
      %v525 = vadd.f32 0.0, %v524
      %v526 = vpop.f32.mrf.mxu0
      %v527 = vadd.f32 0.0, %v526
      %528 = vmatmul.bf16.gmra.mxu0 %v396
      %v529 = vpop.f32.mrf.mxu0
      %v530 = vadd.f32 0.0, %v529
      %v531 = vpop.f32.mrf.mxu0
      %v532 = vadd.f32 0.0, %v531
      %533 = vmatmul.bf16.gmra.mxu0 %v397
      %v534 = vpop.f32.mrf.mxu0
      %v535 = vadd.f32 0.0, %v534
      %v536 = vpop.f32.mrf.mxu0
      %v537 = vadd.f32 0.0, %v536
      %538 = vmatmul.bf16.gmra.mxu0 %v398
      %v539 = vpop.f32.mrf.mxu0
      %v540 = vadd.f32 0.0, %v539
      %v541 = vpop.f32.mrf.mxu0
      %v542 = vadd.f32 0.0, %v541
      %543 = vmatmul.bf16.gmra.mxu0 %v399
      %v544 = vpop.f32.mrf.mxu0
      %v545 = vadd.f32 0.0, %v544
      %v546 = vpop.f32.mrf.mxu0
      %v547 = vadd.f32 0.0, %v546
      %548 = vmatmul.bf16.gmra.mxu0 %v400
      %v549 = vpop.f32.mrf.mxu0
      %v550 = vadd.f32 0.0, %v549
      %v551 = vpop.f32.mrf.mxu0
      %v552 = vadd.f32 0.0, %v551
      %553 = vmatmul.bf16.gmra.mxu0 %v401
      %v554 = vpop.f32.mrf.mxu0
      %v555 = vadd.f32 0.0, %v554
      %v556 = vpop.f32.mrf.mxu0
      %v557 = vadd.f32 0.0, %v556
      %558 = vmatmul.bf16.gmra.mxu0 %v402
      %v559 = vpop.f32.mrf.mxu0
      %v560 = vadd.f32 0.0, %v559
      %v561 = vpop.f32.mrf.mxu0
      %v562 = vadd.f32 0.0, %v561
      %563 = vmatmul.bf16.gmra.mxu0 %v403
      %v564 = vpop.f32.mrf.mxu0
      %v565 = vadd.f32 0.0, %v564
      %v566 = vpop.f32.mrf.mxu0
      %v567 = vadd.f32 0.0, %v566
      %568 = vmatmul.bf16.gmra.mxu0 %v404
      %v569 = vpop.f32.mrf.mxu0
      %v570 = vadd.f32 0.0, %v569
      %v571 = vpop.f32.mrf.mxu0
      %v572 = vadd.f32 0.0, %v571
      %573 = vmatmul.bf16.gmra.mxu0 %v405
      %v574 = vpop.f32.mrf.mxu0
      %v575 = vadd.f32 0.0, %v574
      %v576 = vpop.f32.mrf.mxu0
      %v577 = vadd.f32 0.0, %v576
      %578 = vmatmul.bf16.gmra.mxu0 %v406
      %v579 = vpop.f32.mrf.mxu0
      %v580 = vadd.f32 0.0, %v579
      %v581 = vpop.f32.mrf.mxu0
      %v582 = vadd.f32 0.0, %v581
      %583 = vmatmul.bf16.gmra.mxu0 %v407
      %v584 = vpop.f32.mrf.mxu0
      %v585 = vadd.f32 0.0, %v584
      %v586 = vpop.f32.mrf.mxu0
      %v587 = vadd.f32 0.0, %v586
      %588 = vmatmul.bf16.gmra.mxu0 %v408
      %v589 = vpop.f32.mrf.mxu0
      %v590 = vadd.f32 0.0, %v589
      %v591 = vpop.f32.mrf.mxu0
      %v592 = vadd.f32 0.0, %v591
      %593 = vmatmul.bf16.gmra.mxu0 %v409
      %v594 = vpop.f32.mrf.mxu0
      %v595 = vadd.f32 0.0, %v594
      %v596 = vpop.f32.mrf.mxu0
      %v597 = vadd.f32 0.0, %v596
      %598 = vmatmul.bf16.gmra.mxu0 %v410
      %v599 = vpop.f32.mrf.mxu0
      %v600 = vadd.f32 0.0, %v599
      %v601 = vpop.f32.mrf.mxu0
      %v602 = vadd.f32 0.0, %v601
      %603 = vmatmul.bf16.gmra.mxu0 %v411
      %v604 = vpop.f32.mrf.mxu0
      %v605 = vadd.f32 0.0, %v604
      %v606 = vpop.f32.mrf.mxu0
      %v607 = vadd.f32 0.0, %v606
      %608 = vmatmul.bf16.gmra.mxu0 %v412
      %v609 = vpop.f32.mrf.mxu0
      %v610 = vadd.f32 0.0, %v609
      %v611 = vpop.f32.mrf.mxu0
      %v612 = vadd.f32 0.0, %v611
      %613 = vmatmul.bf16.gmra.mxu0 %v413
      %v614 = vpop.f32.mrf.mxu0
      %v615 = vadd.f32 0.0, %v614
      %v616 = vpop.f32.mrf.mxu0
      %v617 = vadd.f32 0.0, %v616
      %618 = vmatmul.bf16.gmra.mxu0 %v414
      %v619 = vpop.f32.mrf.mxu0
      %v620 = vadd.f32 0.0, %v619
      %v621 = vpop.f32.mrf.mxu0
      %v622 = vadd.f32 0.0, %v621
      %623 = vmatmul.bf16.gmra.mxu0 %v415
      %v624 = vpop.f32.mrf.mxu0
      %v625 = vadd.f32 0.0, %v624
      %v626 = vpop.f32.mrf.mxu0
      %v627 = vadd.f32 0.0, %v626
      %628 = vmatmul.bf16.gmra.mxu0 %v416
      %v629 = vpop.f32.mrf.mxu0
      %v630 = vadd.f32 0.0, %v629
      %v631 = vpop.f32.mrf.mxu0
      %v632 = vadd.f32 0.0, %v631
      %633 = vmatmul.bf16.gmra.mxu0 %v417
      %v634 = vpop.f32.mrf.mxu0
      %v635 = vadd.f32 0.0, %v634
      %v636 = vpop.f32.mrf.mxu0
      %v637 = vadd.f32 0.0, %v636
      %638 = vmatmul.bf16.gmra.mxu0 %v418
      %v639 = vpop.f32.mrf.mxu0
      %v640 = vadd.f32 0.0, %v639
      %v641 = vpop.f32.mrf.mxu0
      %v642 = vadd.f32 0.0, %v641
      %643 = vmatmul.bf16.gmra.mxu0 %v419
      %v644 = vpop.f32.mrf.mxu0
      %v645 = vadd.f32 0.0, %v644
      %v646 = vpop.f32.mrf.mxu0
      %v647 = vadd.f32 0.0, %v646
      %648 = vmatmul.bf16.gmra.mxu0 %v420
      %v649 = vpop.f32.mrf.mxu0
      %v650 = vadd.f32 0.0, %v649
      %v651 = vpop.f32.mrf.mxu0
      %v652 = vadd.f32 0.0, %v651
      %653 = vmatmul.bf16.gmra.mxu0 %v421
      %v654 = vpop.f32.mrf.mxu0
      %v655 = vadd.f32 0.0, %v654
      %v656 = vpop.f32.mrf.mxu0
      %v657 = vadd.f32 0.0, %v656
      %658 = vmatmul.bf16.gmra.mxu0 %v422
      %v659 = vpop.f32.mrf.mxu0
      %v660 = vadd.f32 0.0, %v659
      %v661 = vpop.f32.mrf.mxu0
      %v662 = vadd.f32 0.0, %v661
      %663 = vmatmul.bf16.gmra.mxu0 %v423
      %v664 = vpop.f32.mrf.mxu0
      %v665 = vadd.f32 0.0, %v664
      %v666 = vpop.f32.mrf.mxu0
      %v667 = vadd.f32 0.0, %v666
      %668 = vmatmul.bf16.gmra.mxu0 %v424
      %v669 = vpop.f32.mrf.mxu0
      %v670 = vadd.f32 0.0, %v669
      %v671 = vpop.f32.mrf.mxu0
      %v672 = vadd.f32 0.0, %v671
      %673 = vdwg.mxu0
      %v674 = vpack.c.bf16 %v515, %v515
      %v675 = vpack.c.bf16 %v517, %v517
      %v676 = vpack.c.bf16 %v520, %v520
      %v677 = vpack.c.bf16 %v522, %v522
      %v678 = vpack.c.bf16 %v525, %v525
      %v679 = vpack.c.bf16 %v527, %v527
      %v680 = vpack.c.bf16 %v530, %v530
      %v681 = vpack.c.bf16 %v532, %v532
      %v682 = vpack.c.bf16 %v535, %v535
      %v683 = vpack.c.bf16 %v537, %v537
      %v684 = vpack.c.bf16 %v540, %v540
      %v685 = vpack.c.bf16 %v542, %v542
      %v686 = vpack.c.bf16 %v545, %v545
      %v687 = vpack.c.bf16 %v547, %v547
      %v688 = vpack.c.bf16 %v550, %v550
      %v689 = vpack.c.bf16 %v552, %v552
      %v690 = vpack.c.bf16 %v555, %v555
      %v691 = vpack.c.bf16 %v557, %v557
      %v692 = vpack.c.bf16 %v560, %v560
      %v693 = vpack.c.bf16 %v562, %v562
      %v694 = vpack.c.bf16 %v565, %v565
      %v695 = vpack.c.bf16 %v567, %v567
      %v696 = vpack.c.bf16 %v570, %v570
      %v697 = vpack.c.bf16 %v572, %v572
      %v698 = vpack.c.bf16 %v575, %v575
      %v699 = vpack.c.bf16 %v577, %v577
      %v700 = vpack.c.bf16 %v580, %v580
      %v701 = vpack.c.bf16 %v582, %v582
      %v702 = vpack.c.bf16 %v585, %v585
      %v703 = vpack.c.bf16 %v587, %v587
      %v704 = vpack.c.bf16 %v590, %v590
      %v705 = vpack.c.bf16 %v592, %v592
      %v706 = vpack.c.bf16 %v595, %v595
      %v707 = vpack.c.bf16 %v597, %v597
      %v708 = vpack.c.bf16 %v600, %v600
      %v709 = vpack.c.bf16 %v602, %v602
      %v710 = vpack.c.bf16 %v605, %v605
      %v711 = vpack.c.bf16 %v607, %v607
      %v712 = vpack.c.bf16 %v610, %v610
      %v713 = vpack.c.bf16 %v612, %v612
      %v714 = vpack.c.bf16 %v615, %v615
      %v715 = vpack.c.bf16 %v617, %v617
      %v716 = vpack.c.bf16 %v620, %v620
      %v717 = vpack.c.bf16 %v622, %v622
      %v718 = vpack.c.bf16 %v625, %v625
      %v719 = vpack.c.bf16 %v627, %v627
      %v720 = vpack.c.bf16 %v630, %v630
      %v721 = vpack.c.bf16 %v632, %v632
      %v722 = vpack.c.bf16 %v635, %v635
      %v723 = vpack.c.bf16 %v637, %v637
      %v724 = vpack.c.bf16 %v640, %v640
      %v725 = vpack.c.bf16 %v642, %v642
      %v726 = vpack.c.bf16 %v645, %v645
      %v727 = vpack.c.bf16 %v647, %v647
      %v728 = vpack.c.bf16 %v650, %v650
      %v729 = vpack.c.bf16 %v652, %v652
      %v730 = vpack.c.bf16 %v655, %v655
      %v731 = vpack.c.bf16 %v657, %v657
      %v732 = vpack.c.bf16 %v660, %v660
      %v733 = vpack.c.bf16 %v662, %v662
      %v734 = vpack.c.bf16 %v665, %v665
      %v735 = vpack.c.bf16 %v667, %v667
      %v736 = vpack.c.bf16 %v670, %v670
      %v737 = vpack.c.bf16 %v672, %v672
      %738 = vst [vmem:[%s179] sm:$0xf] %v674
      %739 = vst [vmem:[%s179 + $0x4] sm:$0xf] %v675
      %740 = vst [vmem:[%s179 + $0x8] sm:$0xf] %v676
      %741 = vst [vmem:[%s179 + $0xc] sm:$0xf] %v677
      %742 = vst [vmem:[%s179 + $0x10] sm:$0xf] %v678
      %743 = vst [vmem:[%s179 + $0x14] sm:$0xf] %v679
      %744 = vst [vmem:[%s179 + $0x18] sm:$0xf] %v680
      %745 = vst [vmem:[%s179 + $0x1c] sm:$0xf] %v681
      %746 = vst [vmem:[%s179 + $0x20] sm:$0xf] %v682
      %747 = vst [vmem:[%s179 + $0x24] sm:$0xf] %v683
      %748 = vst [vmem:[%s179 + $0x28] sm:$0xf] %v684
      %749 = vst [vmem:[%s179 + $0x2c] sm:$0xf] %v685
      %750 = vst [vmem:[%s179 + $0x30] sm:$0xf] %v686
      %751 = vst [vmem:[%s179 + $0x34] sm:$0xf] %v687
      %752 = vst [vmem:[%s179 + $0x38] sm:$0xf] %v688
      %753 = vst [vmem:[%s179 + $0x3c] sm:$0xf] %v689
      %754 = vst [vmem:[%s179 + $0x40] sm:$0xf] %v690
      %755 = vst [vmem:[%s179 + $0x44] sm:$0xf] %v691
      %756 = vst [vmem:[%s179 + $0x48] sm:$0xf] %v692
      %757 = vst [vmem:[%s179 + $0x4c] sm:$0xf] %v693
      %758 = vst [vmem:[%s179 + $0x50] sm:$0xf] %v694
      %759 = vst [vmem:[%s179 + $0x54] sm:$0xf] %v695
      %760 = vst [vmem:[%s179 + $0x58] sm:$0xf] %v696
      %761 = vst [vmem:[%s179 + $0x5c] sm:$0xf] %v697
      %762 = vst [vmem:[%s179 + $0x60] sm:$0xf] %v698
      %763 = vst [vmem:[%s179 + $0x64] sm:$0xf] %v699
      %764 = vst [vmem:[%s179 + $0x68] sm:$0xf] %v700
      %765 = vst [vmem:[%s179 + $0x6c] sm:$0xf] %v701
      %766 = vst [vmem:[%s179 + $0x70] sm:$0xf] %v702
      %767 = vst [vmem:[%s179 + $0x74] sm:$0xf] %v703
      %768 = vst [vmem:[%s179 + $0x78] sm:$0xf] %v704
      %769 = vst [vmem:[%s179 + $0x7c] sm:$0xf] %v705
      %770 = vst [vmem:[%s179 + $0x80] sm:$0xf] %v706
      %771 = vst [vmem:[%s179 + $0x84] sm:$0xf] %v707
      %772 = vst [vmem:[%s179 + $0x88] sm:$0xf] %v708
      %773 = vst [vmem:[%s179 + $0x8c] sm:$0xf] %v709
      %774 = vst [vmem:[%s179 + $0x90] sm:$0xf] %v710
      %775 = vst [vmem:[%s179 + $0x94] sm:$0xf] %v711
      %776 = vst [vmem:[%s179 + $0x98] sm:$0xf] %v712
      %777 = vst [vmem:[%s179 + $0x9c] sm:$0xf] %v713
      %778 = vst [vmem:[%s179 + $0xa0] sm:$0xf] %v714
      %779 = vst [vmem:[%s179 + $0xa4] sm:$0xf] %v715
      %780 = vst [vmem:[%s179 + $0xa8] sm:$0xf] %v716
      %781 = vst [vmem:[%s179 + $0xac] sm:$0xf] %v717
      %782 = vst [vmem:[%s179 + $0xb0] sm:$0xf] %v718
      %783 = vst [vmem:[%s179 + $0xb4] sm:$0xf] %v719
      %784 = vst [vmem:[%s179 + $0xb8] sm:$0xf] %v720
      %785 = vst [vmem:[%s179 + $0xbc] sm:$0xf] %v721
      %786 = vst [vmem:[%s179 + $0xc0] sm:$0xf] %v722
      %787 = vst [vmem:[%s179 + $0xc4] sm:$0xf] %v723
      %788 = vst [vmem:[%s179 + $0xc8] sm:$0xf] %v724
      %789 = vst [vmem:[%s179 + $0xcc] sm:$0xf] %v725
      %790 = vst [vmem:[%s179 + $0xd0] sm:$0xf] %v726
      %791 = vst [vmem:[%s179 + $0xd4] sm:$0xf] %v727
      %792 = vst [vmem:[%s179 + $0xd8] sm:$0xf] %v728
      %793 = vst [vmem:[%s179 + $0xdc] sm:$0xf] %v729
      %794 = vst [vmem:[%s179 + $0xe0] sm:$0xf] %v730
      %795 = vst [vmem:[%s179 + $0xe4] sm:$0xf] %v731
      %796 = vst [vmem:[%s179 + $0xe8] sm:$0xf] %v732
      %797 = vst [vmem:[%s179 + $0xec] sm:$0xf] %v733
      %798 = vst [vmem:[%s179 + $0xf0] sm:$0xf] %v734
      %799 = vst [vmem:[%s179 + $0xf4] sm:$0xf] %v735
      %800 = vst [vmem:[%s179 + $0xf8] sm:$0xf] %v736
      %801 = vst [vmem:[%s179 + $0xfc] sm:$0xf] %v737
      %s802 = smul.u32 %s15, 512
      %s803 = ssub.s32 8192, %s802
      %p804 = scmp.lt.s32.totalorder %s803, 512
      %s805 = scalar_select %p804, %s803, 512
      %s806 = scvt.s32.f32 %s805
      %v807 = vadd.f32 %v515, %v517
      %v808 = vadd.f32 %v807, %v520
      %v809 = vadd.f32 %v808, %v522
      %v810 = vadd.f32 %v809, %v525
      %v811 = vadd.f32 %v810, %v527
      %v812 = vadd.f32 %v811, %v530
      %v813 = vadd.f32 %v812, %v532
      %v814 = vadd.f32 %v813, %v535
      %v815 = vadd.f32 %v814, %v537
      %v816 = vadd.f32 %v815, %v540
      %v817 = vadd.f32 %v816, %v542
      %v818 = vadd.f32 %v817, %v545
      %v819 = vadd.f32 %v818, %v547
      %v820 = vadd.f32 %v819, %v550
      %v821 = vadd.f32 %v820, %v552
      %v822 = vadd.f32 %v821, %v555
      %v823 = vadd.f32 %v822, %v557
      %v824 = vadd.f32 %v823, %v560
      %v825 = vadd.f32 %v824, %v562
      %v826 = vadd.f32 %v825, %v565
      %v827 = vadd.f32 %v826, %v567
      %v828 = vadd.f32 %v827, %v570
      %v829 = vadd.f32 %v828, %v572
      %v830 = vadd.f32 %v829, %v575
      %v831 = vadd.f32 %v830, %v577
      %v832 = vadd.f32 %v831, %v580
      %v833 = vadd.f32 %v832, %v582
      %v834 = vadd.f32 %v833, %v585
      %v835 = vadd.f32 %v834, %v587
      %v836 = vadd.f32 %v835, %v590
      %v837 = vadd.f32 %v836, %v592
      %v838 = vadd.f32 %v837, %v595
      %v839 = vadd.f32 %v838, %v597
      %v840 = vadd.f32 %v839, %v600
      %v841 = vadd.f32 %v840, %v602
      %v842 = vadd.f32 %v841, %v605
      %v843 = vadd.f32 %v842, %v607
      %v844 = vadd.f32 %v843, %v610
      %v845 = vadd.f32 %v844, %v612
      %v846 = vadd.f32 %v845, %v615
      %v847 = vadd.f32 %v846, %v617
      %v848 = vadd.f32 %v847, %v620
      %v849 = vadd.f32 %v848, %v622
      %v850 = vadd.f32 %v849, %v625
      %v851 = vadd.f32 %v850, %v627
      %v852 = vadd.f32 %v851, %v630
      %v853 = vadd.f32 %v852, %v632
      %v854 = vadd.f32 %v853, %v635
      %v855 = vadd.f32 %v854, %v637
      %v856 = vadd.f32 %v855, %v640
      %v857 = vadd.f32 %v856, %v642
      %v858 = vadd.f32 %v857, %v645
      %v859 = vadd.f32 %v858, %v647
      %v860 = vadd.f32 %v859, %v650
      %v861 = vadd.f32 %v860, %v652
      %v862 = vadd.f32 %v861, %v655
      %v863 = vadd.f32 %v862, %v657
      %v864 = vadd.f32 %v863, %v660
      %v865 = vadd.f32 %v864, %v662
      %v866 = vadd.f32 %v865, %v665
      %v867 = vadd.f32 %v866, %v667
      %v868 = vadd.f32 %v867, %v670
      %v869 = vadd.f32 %v868, %v672
      %v870 = vrot.slane %v869, 4
      %v871 = vadd.f32 %v869, %v870
      %v872 = vrot.slane %v871, 2
      %v873 = vadd.f32 %v871, %v872
      %v874 = vrot.slane %v873, 1
      %v875 = vadd.f32 %v873, %v874
      %v876 = vstv %s806
      %v877 = vrcp.pop %v876
      %v878 = vmul.f32 %v876, %v877
      %v879 = vsub.f32 1.0, %v878
      %v880 = vmul.f32 %v877, %v879
      %v881 = vadd.f32 %v877, %v880
      %vm882 = vweird.f32 %v876
      %vm883 = vweird.f32 %v877
      %vm884 = vmor %vm882, %vm883
      %v885 = vsel %vm884, %v877, %v881
      %v886 = vand.u32 2147483647, %v876
      %vm887 = vcmp.eq.f32.partialorder %v886, 8.507059e+37
      %v888 = vand.u32 %v876, 2147483648
      %v889 = vor.u32 1.1754944e-38, %v888
      %v890 = vsel %vm887, %v889, %v885
      %v891 = vmul.f32 %v875, %v890
      %v892 = vsub.f32 %v515, %v891
      %v893 = vsub.f32 %v517, %v891
      %v894 = vsub.f32 %v520, %v891
      %v895 = vsub.f32 %v522, %v891
      %v896 = vsub.f32 %v525, %v891
      %v897 = vsub.f32 %v527, %v891
      %v898 = vsub.f32 %v530, %v891
      %v899 = vsub.f32 %v532, %v891
      %v900 = vsub.f32 %v535, %v891
      %v901 = vsub.f32 %v537, %v891
      %v902 = vsub.f32 %v540, %v891
      %v903 = vsub.f32 %v542, %v891
      %v904 = vsub.f32 %v545, %v891
      %v905 = vsub.f32 %v547, %v891
      %v906 = vsub.f32 %v550, %v891
      %v907 = vsub.f32 %v552, %v891
      %v908 = vsub.f32 %v555, %v891
      %v909 = vsub.f32 %v557, %v891
      %v910 = vsub.f32 %v560, %v891
      %v911 = vsub.f32 %v562, %v891
      %v912 = vsub.f32 %v565, %v891
      %v913 = vsub.f32 %v567, %v891
      %v914 = vsub.f32 %v570, %v891
      %v915 = vsub.f32 %v572, %v891
      %v916 = vsub.f32 %v575, %v891
      %v917 = vsub.f32 %v577, %v891
      %v918 = vsub.f32 %v580, %v891
      %v919 = vsub.f32 %v582, %v891
      %v920 = vsub.f32 %v585, %v891
      %v921 = vsub.f32 %v587, %v891
      %v922 = vsub.f32 %v590, %v891
      %v923 = vsub.f32 %v592, %v891
      %v924 = vsub.f32 %v595, %v891
      %v925 = vsub.f32 %v597, %v891
      %v926 = vsub.f32 %v600, %v891
      %v927 = vsub.f32 %v602, %v891
      %v928 = vsub.f32 %v605, %v891
      %v929 = vsub.f32 %v607, %v891
      %v930 = vsub.f32 %v610, %v891
      %v931 = vsub.f32 %v612, %v891
      %v932 = vsub.f32 %v615, %v891
      %v933 = vsub.f32 %v617, %v891
      %v934 = vsub.f32 %v620, %v891
      %v935 = vsub.f32 %v622, %v891
      %v936 = vsub.f32 %v625, %v891
      %v937 = vsub.f32 %v627, %v891
      %v938 = vsub.f32 %v630, %v891
      %v939 = vsub.f32 %v632, %v891
      %v940 = vsub.f32 %v635, %v891
      %v941 = vsub.f32 %v637, %v891
      %v942 = vsub.f32 %v640, %v891
      %v943 = vsub.f32 %v642, %v891
      %v944 = vsub.f32 %v645, %v891
      %v945 = vsub.f32 %v647, %v891
      %v946 = vsub.f32 %v650, %v891
      %v947 = vsub.f32 %v652, %v891
      %v948 = vsub.f32 %v655, %v891
      %v949 = vsub.f32 %v657, %v891
      %v950 = vsub.f32 %v660, %v891
      %v951 = vsub.f32 %v662, %v891
      %v952 = vsub.f32 %v665, %v891
      %v953 = vsub.f32 %v667, %v891
      %v954 = vsub.f32 %v670, %v891
      %v955 = vsub.f32 %v672, %v891
      %v956 = vmul.f32 %v892, %v892
      %v957 = vmul.f32 %v893, %v893
      %v958 = vmul.f32 %v894, %v894
      %v959 = vmul.f32 %v895, %v895
      %v960 = vmul.f32 %v896, %v896
      %v961 = vmul.f32 %v897, %v897
      %v962 = vmul.f32 %v898, %v898
      %v963 = vmul.f32 %v899, %v899
      %v964 = vmul.f32 %v900, %v900
      %v965 = vmul.f32 %v901, %v901
      %v966 = vmul.f32 %v902, %v902
      %v967 = vmul.f32 %v903, %v903
      %v968 = vmul.f32 %v904, %v904
      %v969 = vmul.f32 %v905, %v905
      %v970 = vmul.f32 %v906, %v906
      %v971 = vmul.f32 %v907, %v907
      %v972 = vmul.f32 %v908, %v908
      %v973 = vmul.f32 %v909, %v909
      %v974 = vmul.f32 %v910, %v910
      %v975 = vmul.f32 %v911, %v911
      %v976 = vmul.f32 %v912, %v912
      %v977 = vmul.f32 %v913, %v913
      %v978 = vmul.f32 %v914, %v914
      %v979 = vmul.f32 %v915, %v915
      %v980 = vmul.f32 %v916, %v916
      %v981 = vmul.f32 %v917, %v917
      %v982 = vmul.f32 %v918, %v918
      %v983 = vmul.f32 %v919, %v919
      %v984 = vmul.f32 %v920, %v920
      %v985 = vmul.f32 %v921, %v921
      %v986 = vmul.f32 %v922, %v922
      %v987 = vmul.f32 %v923, %v923
      %v988 = vmul.f32 %v924, %v924
      %v989 = vmul.f32 %v925, %v925
      %v990 = vmul.f32 %v926, %v926
      %v991 = vmul.f32 %v927, %v927
      %v992 = vmul.f32 %v928, %v928
      %v993 = vmul.f32 %v929, %v929
      %v994 = vmul.f32 %v930, %v930
      %v995 = vmul.f32 %v931, %v931
      %v996 = vmul.f32 %v932, %v932
      %v997 = vmul.f32 %v933, %v933
      %v998 = vmul.f32 %v934, %v934
      %v999 = vmul.f32 %v935, %v935
      %v1000 = vmul.f32 %v936, %v936
      %v1001 = vmul.f32 %v937, %v937
      %v1002 = vmul.f32 %v938, %v938
      %v1003 = vmul.f32 %v939, %v939
      %v1004 = vmul.f32 %v940, %v940
      %v1005 = vmul.f32 %v941, %v941
      %v1006 = vmul.f32 %v942, %v942
      %v1007 = vmul.f32 %v943, %v943
      %v1008 = vmul.f32 %v944, %v944
      %v1009 = vmul.f32 %v945, %v945
      %v1010 = vmul.f32 %v946, %v946
      %v1011 = vmul.f32 %v947, %v947
      %v1012 = vmul.f32 %v948, %v948
      %v1013 = vmul.f32 %v949, %v949
      %v1014 = vmul.f32 %v950, %v950
      %v1015 = vmul.f32 %v951, %v951
      %v1016 = vmul.f32 %v952, %v952
      %v1017 = vmul.f32 %v953, %v953
      %v1018 = vmul.f32 %v954, %v954
      %v1019 = vmul.f32 %v955, %v955
      %v1020 = vadd.f32 %v956, %v957
      %v1021 = vadd.f32 %v1020, %v958
      %v1022 = vadd.f32 %v1021, %v959
      %v1023 = vadd.f32 %v1022, %v960
      %v1024 = vadd.f32 %v1023, %v961
      %v1025 = vadd.f32 %v1024, %v962
      %v1026 = vadd.f32 %v1025, %v963
      %v1027 = vadd.f32 %v1026, %v964
      %v1028 = vadd.f32 %v1027, %v965
      %v1029 = vadd.f32 %v1028, %v966
      %v1030 = vadd.f32 %v1029, %v967
      %v1031 = vadd.f32 %v1030, %v968
      %v1032 = vadd.f32 %v1031, %v969
      %v1033 = vadd.f32 %v1032, %v970
      %v1034 = vadd.f32 %v1033, %v971
      %v1035 = vadd.f32 %v1034, %v972
      %v1036 = vadd.f32 %v1035, %v973
      %v1037 = vadd.f32 %v1036, %v974
      %v1038 = vadd.f32 %v1037, %v975
      %v1039 = vadd.f32 %v1038, %v976
      %v1040 = vadd.f32 %v1039, %v977
      %v1041 = vadd.f32 %v1040, %v978
      %v1042 = vadd.f32 %v1041, %v979
      %v1043 = vadd.f32 %v1042, %v980
      %v1044 = vadd.f32 %v1043, %v981
      %v1045 = vadd.f32 %v1044, %v982
      %v1046 = vadd.f32 %v1045, %v983
      %v1047 = vadd.f32 %v1046, %v984
      %v1048 = vadd.f32 %v1047, %v985
      %v1049 = vadd.f32 %v1048, %v986
      %v1050 = vadd.f32 %v1049, %v987
      %v1051 = vadd.f32 %v1050, %v988
      %v1052 = vadd.f32 %v1051, %v989
      %v1053 = vadd.f32 %v1052, %v990
      %v1054 = vadd.f32 %v1053, %v991
      %v1055 = vadd.f32 %v1054, %v992
      %v1056 = vadd.f32 %v1055, %v993
      %v1057 = vadd.f32 %v1056, %v994
      %v1058 = vadd.f32 %v1057, %v995
      %v1059 = vadd.f32 %v1058, %v996
      %v1060 = vadd.f32 %v1059, %v997
      %v1061 = vadd.f32 %v1060, %v998
      %v1062 = vadd.f32 %v1061, %v999
      %v1063 = vadd.f32 %v1062, %v1000
      %v1064 = vadd.f32 %v1063, %v1001
      %v1065 = vadd.f32 %v1064, %v1002
      %v1066 = vadd.f32 %v1065, %v1003
      %v1067 = vadd.f32 %v1066, %v1004
      %v1068 = vadd.f32 %v1067, %v1005
      %v1069 = vadd.f32 %v1068, %v1006
      %v1070 = vadd.f32 %v1069, %v1007
      %v1071 = vadd.f32 %v1070, %v1008
      %v1072 = vadd.f32 %v1071, %v1009
      %v1073 = vadd.f32 %v1072, %v1010
      %v1074 = vadd.f32 %v1073, %v1011
      %v1075 = vadd.f32 %v1074, %v1012
      %v1076 = vadd.f32 %v1075, %v1013
      %v1077 = vadd.f32 %v1076, %v1014
      %v1078 = vadd.f32 %v1077, %v1015
      %v1079 = vadd.f32 %v1078, %v1016
      %v1080 = vadd.f32 %v1079, %v1017
      %v1081 = vadd.f32 %v1080, %v1018
      %v1082 = vadd.f32 %v1081, %v1019
      %v1083 = vrot.slane %v1082, 4
      %v1084 = vadd.f32 %v1082, %v1083
      %v1085 = vrot.slane %v1084, 2
      %v1086 = vadd.f32 %v1084, %v1085
      %v1087 = vrot.slane %v1086, 1
      %v1088 = vadd.f32 %v1086, %v1087
      %s1089 = ssub.f32 512.0, %s806
      %v1090 = vstv %s1089
      %v1091 = vmul.f32 %v1090, %v891
      %v1092 = vmul.f32 %v1091, %v891
      %v1093 = vsub.f32 %v1088, %v1092
      %vm1094 = vcmask 1040384
      %v1095 = vsel %vm1094, %v875, %v1093
      %vm1096 = vcmask 1041408
      %v1097 = vsel %vm1096, %v1095, 0.0
      %1098 = vst [vmem:[%s184] sm:$0xff] %v1097
      %s1099 = smul.u32 64, %s15
      %p1100 = scmp.lt.s32.totalorder %s1099, 1023
      %s1101 = scalar_select %p1100, %s1099, 1023
      %s1102 = smul.addr %s1101, 4
      %s1103 = scalar_lea.vmem %s2, %s1102
      %p1104 = scmp.lt.s32.totalorder %s15, 15
      %s1105 = scalar_select %p1104, %s15, 15
      %s1106 = smul.addr %s1105, 8
      %s1107 = scalar_lea.vmem %s3, %s1106
      // Predicated region
      $region29: #{lu_conv_forward.2} parent=27 // pred_check
        %p1108 = pneg %p80
      $region30: #{lu_conv_forward.2} parent=27 // pred_check_branch
        %1110 = sbr.rel (%p1108) target = $region32
      $region31: #{lu_conv_forward.2} parent=27 // pred_region
        %s1111 = smul.u32 64, %s15
      $region32: #{lu_conv_forward.2} parent=27 // pred_fallthru
        _
      // Predicated region
      $region33: #{lu_conv_forward.2} parent=27 // pred_check
        %p1112 = pneg %p106
      $region34: #{lu_conv_forward.2} parent=27 // pred_check_branch
        %1114 = sbr.rel (%p1112) target = $region36
      $region35: #{lu_conv_forward.2} parent=27 // pred_region
        _
      $region36: #{lu_conv_forward.2} parent=27 // pred_fallthru
        _
    $region28: #{lu_conv_forward.2} parent=5 // pred_fallthru
      _
    %p1115 = scmp.le.s32.totalorder 2, %s10
    // Predicated region
    $region37: #{lu_conv_forward.2} parent=5 // pred_check
      %p1116 = pneg %p1115
    $region38: #{lu_conv_forward.2} parent=5 // pred_check_branch
      %1118 = sbr.rel (%p1116) target = $region40
    $region39: #{lu_conv_forward.2} parent=5 // pred_region
      %s1119 = ssub.s32 %s10, 2
      // Predicated region
      $region41: #{lu_conv_forward.2} parent=39 // pred_check
        %p1120 = pneg %p86
      $region42: #{lu_conv_forward.2} parent=39 // pred_check_branch
        %1122 = sbr.rel (%p1120) target = $region44
      $region43: #{lu_conv_forward.2} parent=39 // pred_region
        %s1123 = smul.u32 64, %s16
        %p1124 = scmp.lt.s32.totalorder %s1123, 1023
        %s1125 = scalar_select %p1124, %s1123, 1023
        %s1126 = smul.addr %s1125, 4
        %s1127 = scalar_lea.vmem %s2, %s1126
      $region44: #{lu_conv_forward.2} parent=39 // pred_fallthru
        _
      // Predicated region
      $region45: #{lu_conv_forward.2} parent=39 // pred_check
        %p1128 = pneg %p112
      $region46: #{lu_conv_forward.2} parent=39 // pred_check_branch
        %1130 = sbr.rel (%p1128) target = $region48
      $region47: #{lu_conv_forward.2} parent=39 // pred_region
        %p1131 = scmp.lt.s32.totalorder %s16, 15
        %s1132 = scalar_select %p1131, %s16, 15
        %s1133 = smul.addr %s1132, 8
        %s1134 = scalar_lea.vmem %s3, %s1133
      $region48: #{lu_conv_forward.2} parent=39 // pred_fallthru
        _
    $region40: #{lu_conv_forward.2} parent=5 // pred_fallthru
      _
  $region6: #{lu_conv_forward.2} parent=0 // loop_footer
    %s14 = sadd.s32 1, %s10
  $region7: #{lu_conv_forward.2} parent=0 // loop_footer_branch
    %9 = sbr.rel target = $region3
  $region8: #{lu_conv_forward.2} parent=0 // loop_exit
    _

// kernel: lu_conv_forward.3
$region0: #{lu_conv_forward.3}
  #allocation0 [shape = 'u32[]', space=smem, size = 0x4, offset = 0x4, fixed_abs, tag = 'smem constant byte address 0x4 - core index']
  #allocation1 [shape = 'u32[72,128]{1,0:T(1,128)}', space=vmem, size = 0x9000, scoped, tag = 'internal scratch']
  %s0 = inlined_call_operand.vmem [shape: bf16[8192,128], index: 0, kind: input, shape index: {}]
  %s1 = inlined_call_operand.vmem [shape: f32[1,128], index: 1, kind: input, shape index: {}]
  %s2 = inlined_call_operand.vmem [shape: f32[1,128], index: 2, kind: input, shape index: {}]
  %s3 = inlined_call_operand.vmem [shape: f32[1,128], index: 3, kind: input, shape index: {}]
  %s4 = inlined_call_operand.hbm [shape: f32[8192,128], index: 4, kind: output, shape index: {}]
  %s5 = sld [smem:[#allocation0]]
  $region49: #{lu_conv_forward.3} parent=0
    _
  %s7 = ssub.s32 1, %s5
  %s8 = scalar_select 0, %s7, %s5
  $region1: #{lu_conv_forward.3} parent=0
    #allocation2 [shape = 'u8[2097152]{0}', space=vmem, size = 0x200000, scoped, tag = 'output window, operand 0']
    #allocation3 [shape = 's32[2]{0}', space=sflag, size = 0x8, scoped, tag = 'scoped memory for lu_conv_forward.3']
    %9 = vsyncpa [#allocation3], 0
    %s10 = scalar_lea.sflag [#allocation3], 1
    %11 = vsyncpa %s10, 0
    loop: start=0, step=1, limit=6
    $region2: #{lu_conv_forward.3} parent=1 // loop_pre_header
      _
    $region3: #{lu_conv_forward.3} parent=1 // loop_header
      %s13 = sphi 0, %s17
      %p14 = scmp.ge.s32.totalorder %s13, 6
      %s23 = sphi 0, %s25
      %s26 = sphi 0, %s23
      %s27 = sphi 0, %s26
      %s43 = sphi 0, %s27
      %s47 = sphi 0, %s47
      %s49 = sphi 0, %s47
      %s50 = sphi 0, %s49
      %s64 = sphi 0, %s50
      %s68 = sphi 0, %s68
      %s70 = sphi 0, %s68
      %s71 = sphi 0, %s70
      %s85 = sphi 0, %s71
      %s89 = sphi 0, %s89
      %s91 = sphi 0, %s89
      %s92 = sphi 0, %s91
      %s106 = sphi 0, %s92
      %s112 = sphi 0, %s114
      %s115 = sphi 0, %s112
      %s116 = sphi 0, %s115
      %s132 = sphi 0, %s116
    $region4: #{lu_conv_forward.3} parent=1 // loop_header_branch
      %16 = sbr.rel (%p14) target = $region8
    $region5: #{lu_conv_forward.3} parent=1 // loop_body
      %s18 = ssub.s32 %s13, 1
      %s19 = ssub.s32 %s13, 2
      %s20 = sadd.s32 %s13, 1
      %s21 = ssub.s32 %s13, %s20
      %p22 = scmp.eq.s32.totalorder %s21, 0
      %s24 = sadd.s32 %s23, 1
      %s25 = scalar_select %p22, %s23, %s24
      %p28 = pneg %p22
      %p29 = scmp.eq.s32.totalorder %s13, 3
      %p30 = por %p28, %p29
      %p31 = scmp.ne.s32.totalorder %s23, %s26
      %p32 = scmp.eq.s32.totalorder %s13, 0
      %p33 = por %p31, %p32
      %p34 = scmp.ne.s32.totalorder %s23, %s26
      %p35 = scmp.eq.s32.totalorder %s18, 3
      %p36 = por %p34, %p35
      %p37 = scmp.ne.s32.totalorder %s26, %s27
      %p38 = scmp.eq.s32.totalorder %s18, 0
      %p39 = por %p37, %p38
      %p40 = scmp.ne.s32.totalorder %s26, %s27
      %p41 = scmp.eq.s32.totalorder %s19, 3
      %p42 = por %p40, %p41
      %p44 = scmp.ne.s32.totalorder %s27, %s43
      %p45 = scmp.eq.s32.totalorder %s19, 0
      %p46 = por %p44, %p45
      %s48 = sadd.s32 %s47, 1
      %p51 = scmp.eq.s32.totalorder %s13, 3
      %p52 = scmp.ne.s32.totalorder %s47, %s49
      %p53 = scmp.eq.s32.totalorder %s13, 0
      %p54 = por %p52, %p53
      %p55 = scmp.ne.s32.totalorder %s47, %s49
      %p56 = scmp.eq.s32.totalorder %s18, 3
      %p57 = por %p55, %p56
      %p58 = scmp.ne.s32.totalorder %s49, %s50
      %p59 = scmp.eq.s32.totalorder %s18, 0
      %p60 = por %p58, %p59
      %p61 = scmp.ne.s32.totalorder %s49, %s50
      %p62 = scmp.eq.s32.totalorder %s19, 3
      %p63 = por %p61, %p62
      %p65 = scmp.ne.s32.totalorder %s50, %s64
      %p66 = scmp.eq.s32.totalorder %s19, 0
      %p67 = por %p65, %p66
      %s69 = sadd.s32 %s68, 1
      %p72 = scmp.eq.s32.totalorder %s13, 3
      %p73 = scmp.ne.s32.totalorder %s68, %s70
      %p74 = scmp.eq.s32.totalorder %s13, 0
      %p75 = por %p73, %p74
      %p76 = scmp.ne.s32.totalorder %s68, %s70
      %p77 = scmp.eq.s32.totalorder %s18, 3
      %p78 = por %p76, %p77
      %p79 = scmp.ne.s32.totalorder %s70, %s71
      %p80 = scmp.eq.s32.totalorder %s18, 0
      %p81 = por %p79, %p80
      %p82 = scmp.ne.s32.totalorder %s70, %s71
      %p83 = scmp.eq.s32.totalorder %s19, 3
      %p84 = por %p82, %p83
      %p86 = scmp.ne.s32.totalorder %s71, %s85
      %p87 = scmp.eq.s32.totalorder %s19, 0
      %p88 = por %p86, %p87
      %s90 = sadd.s32 %s89, 1
      %p93 = scmp.eq.s32.totalorder %s13, 3
      %p94 = scmp.ne.s32.totalorder %s89, %s91
      %p95 = scmp.eq.s32.totalorder %s13, 0
      %p96 = por %p94, %p95
      %p97 = scmp.ne.s32.totalorder %s89, %s91
      %p98 = scmp.eq.s32.totalorder %s18, 3
      %p99 = por %p97, %p98
      %p100 = scmp.ne.s32.totalorder %s91, %s92
      %p101 = scmp.eq.s32.totalorder %s18, 0
      %p102 = por %p100, %p101
      %p103 = scmp.ne.s32.totalorder %s91, %s92
      %p104 = scmp.eq.s32.totalorder %s19, 3
      %p105 = por %p103, %p104
      %p107 = scmp.ne.s32.totalorder %s92, %s106
      %p108 = scmp.eq.s32.totalorder %s19, 0
      %p109 = por %p107, %p108
      %s110 = ssub.s32 %s13, %s20
      %p111 = scmp.eq.s32.totalorder %s110, 0
      %s113 = sadd.s32 %s112, 1
      %s114 = scalar_select %p111, %s112, %s113
      %p117 = pneg %p111
      %p118 = scmp.eq.s32.totalorder %s13, 3
      %p119 = por %p117, %p118
      %p120 = scmp.ne.s32.totalorder %s112, %s115
      %p121 = scmp.eq.s32.totalorder %s13, 0
      %p122 = por %p120, %p121
      %p123 = scmp.ne.s32.totalorder %s112, %s115
      %p124 = scmp.eq.s32.totalorder %s18, 3
      %p125 = por %p123, %p124
      %p126 = scmp.ne.s32.totalorder %s115, %s116
      %p127 = scmp.eq.s32.totalorder %s18, 0
      %p128 = por %p126, %p127
      %p129 = scmp.ne.s32.totalorder %s115, %s116
      %p130 = scmp.eq.s32.totalorder %s19, 3
      %p131 = por %p129, %p130
      %p133 = scmp.ne.s32.totalorder %s116, %s132
      %p134 = scmp.eq.s32.totalorder %s19, 0
      %p135 = por %p133, %p134
      %p136 = scmp.le.s32.totalorder 1, %s13
      %p137 = scmp.lt.s32.totalorder %s13, 5
      %p138 = pnand %p136, %p137
      %p139 = pneg %p138
      // Predicated region
      $region9: #{lu_conv_forward.3} parent=5 // pred_check
        _
      $region10: #{lu_conv_forward.3} parent=5 // pred_check_branch
        %141 = sbr.rel (%p138) target = $region12
      $region11: #{lu_conv_forward.3} parent=5 // pred_region
        %s142 = ssub.s32 %s13, 1
        // Predicated region
        $region13: #{lu_conv_forward.3} parent=11 // pred_check
          %p143 = pneg %p60
        $region14: #{lu_conv_forward.3} parent=11 // pred_check_branch
          %145 = sbr.rel (%p143) target = $region16
        $region15: #{lu_conv_forward.3} parent=11 // pred_region
          _
        $region16: #{lu_conv_forward.3} parent=11 // pred_fallthru
          _
        // Predicated region
        $region17: #{lu_conv_forward.3} parent=11 // pred_check
          %p146 = pneg %p81
        $region18: #{lu_conv_forward.3} parent=11 // pred_check_branch
          %148 = sbr.rel (%p146) target = $region20
        $region19: #{lu_conv_forward.3} parent=11 // pred_region
          _
        $region20: #{lu_conv_forward.3} parent=11 // pred_fallthru
          _
        // Predicated region
        $region21: #{lu_conv_forward.3} parent=11 // pred_check
          %p149 = pneg %p102
        $region22: #{lu_conv_forward.3} parent=11 // pred_check_branch
          %151 = sbr.rel (%p149) target = $region24
        $region23: #{lu_conv_forward.3} parent=11 // pred_region
          _
        $region24: #{lu_conv_forward.3} parent=11 // pred_fallthru
          _
      $region12: #{lu_conv_forward.3} parent=5 // pred_fallthru
        _
      %p152 = scmp.lt.s32.totalorder %s13, 4
      // Predicated region
      $region25: #{lu_conv_forward.3} parent=5 // pred_check
        %p153 = pneg %p152
      $region26: #{lu_conv_forward.3} parent=5 // pred_check_branch
        %155 = sbr.rel (%p153) target = $region28
      $region27: #{lu_conv_forward.3} parent=5 // pred_region
        // Predicated region
        $region29: #{lu_conv_forward.3} parent=27 // pred_check
          %p156 = pneg %p33
        $region30: #{lu_conv_forward.3} parent=27 // pred_check_branch
          %158 = sbr.rel (%p156) target = $region32
        $region31: #{lu_conv_forward.3} parent=27 // pred_region
          %s159 = smul.u32 256, %s13
          %p160 = scmp.lt.s32.totalorder %s159, 1023
          %s161 = scalar_select %p160, %s159, 1023
          %s162 = smul.addr %s161, 4
          %s163 = scalar_lea.vmem %s0, %s162
          %s164 = smul.u32 256, %s13
        $region32: #{lu_conv_forward.3} parent=27 // pred_fallthru
          _
      $region28: #{lu_conv_forward.3} parent=5 // pred_fallthru
        _
      %p165 = scmp.le.s32.totalorder 1, %s13
      %p166 = scmp.lt.s32.totalorder %s13, 5
      %p167 = pnand %p165, %p166
      %p168 = pneg %p167
      // Predicated region
      $region33: #{lu_conv_forward.3} parent=5 // pred_check
        _
      $region34: #{lu_conv_forward.3} parent=5 // pred_check_branch
        %170 = sbr.rel (%p167) target = $region36
      $region35: #{lu_conv_forward.3} parent=5 // pred_region
        %s171 = ssub.s32 %s13, 1
        %s172 = smul.u32 256, %s18
        %p173 = scmp.lt.s32.totalorder %s172, 1023
        %s174 = scalar_select %p173, %s172, 1023
        %s175 = smul.addr %s174, 4
        %s176 = scalar_lea.vmem %s0, %s175
        %p177 = pneg %p39
        %p178 = pneg %p36
        %p179 = pneg %p60
        %p180 = pneg %p57
        %p181 = pneg %p81
        %p182 = pneg %p78
        %p183 = pneg %p102
        %p184 = pneg %p99
        %p185 = pneg %p128
        %p186 = pneg %p125
        %s187 = sand.u32 %s115, 1
        %s188 = scalar_lea.sflag [#allocation3], %s187
        %s189 = sand.u32 %s115, 1
        %s190 = smul.addr %s189, 2048
        %s191 = scalar_lea.vmem [#allocation2], %s190
        %s192 = smul.u32 256, %s18
        %p193 = scmp.lt.s32.totalorder %s192, 1023
        %s194 = scalar_select %p193, %s192, 1023
        %s195 = smul.addr %s194, 4
        %s196 = scalar_lea.vmem %s0, %s195
        %s197 = smul.u32 256, %s18
        %s198 = smul.u32 256, %s18
        %v199 = vld [vmem:[%s196] sm:$0xf]
        %v200 = vld [vmem:[%s196 + $0x4] sm:$0xf]
        %v201 = vld [vmem:[%s196 + $0x8] sm:$0xf]
        %v202 = vld [vmem:[%s196 + $0xc] sm:$0xf]
        %v203 = vld [vmem:[%s196 + $0x10] sm:$0xf]
        %v204 = vld [vmem:[%s196 + $0x14] sm:$0xf]
        %v205 = vld [vmem:[%s196 + $0x18] sm:$0xf]
        %v206 = vld [vmem:[%s196 + $0x1c] sm:$0xf]
        %v207 = vld [vmem:[%s196 + $0x20] sm:$0xf]
        %v208 = vld [vmem:[%s196 + $0x24] sm:$0xf]
        %v209 = vld [vmem:[%s196 + $0x28] sm:$0xf]
        %v210 = vld [vmem:[%s196 + $0x2c] sm:$0xf]
        %v211 = vld [vmem:[%s196 + $0x30] sm:$0xf]
        %v212 = vld [vmem:[%s196 + $0x34] sm:$0xf]
        %v213 = vld [vmem:[%s196 + $0x38] sm:$0xf]
        %v214 = vld [vmem:[%s196 + $0x3c] sm:$0xf]
        %v215 = vld [vmem:[%s196 + $0x40] sm:$0xf]
        %v216 = vld [vmem:[%s196 + $0x44] sm:$0xf]
        %v217 = vld [vmem:[%s196 + $0x48] sm:$0xf]
        %v218 = vld [vmem:[%s196 + $0x4c] sm:$0xf]
        %v219 = vld [vmem:[%s196 + $0x50] sm:$0xf]
        %v220 = vld [vmem:[%s196 + $0x54] sm:$0xf]
        %v221 = vld [vmem:[%s196 + $0x58] sm:$0xf]
        %v222 = vld [vmem:[%s196 + $0x5c] sm:$0xf]
        %v223 = vld [vmem:[%s196 + $0x60] sm:$0xf]
        %v224 = vld [vmem:[%s196 + $0x64] sm:$0xf]
        %v225 = vld [vmem:[%s196 + $0x68] sm:$0xf]
        %v226 = vld [vmem:[%s196 + $0x6c] sm:$0xf]
        %v227 = vld [vmem:[%s196 + $0x70] sm:$0xf]
        %v228 = vld [vmem:[%s196 + $0x74] sm:$0xf]
        %v229 = vld [vmem:[%s196 + $0x78] sm:$0xf]
        %v230 = vld [vmem:[%s196 + $0x7c] sm:$0xf]
        %v231 = vld [vmem:[%s196 + $0x80] sm:$0xf]
        %v232 = vld [vmem:[%s196 + $0x84] sm:$0xf]
        %v233 = vld [vmem:[%s196 + $0x88] sm:$0xf]
        %v234 = vld [vmem:[%s196 + $0x8c] sm:$0xf]
        %v235 = vld [vmem:[%s196 + $0x90] sm:$0xf]
        %v236 = vld [vmem:[%s196 + $0x94] sm:$0xf]
        %v237 = vld [vmem:[%s196 + $0x98] sm:$0xf]
        %v238 = vld [vmem:[%s196 + $0x9c] sm:$0xf]
        %v239 = vld [vmem:[%s196 + $0xa0] sm:$0xf]
        %v240 = vld [vmem:[%s196 + $0xa4] sm:$0xf]
        %v241 = vld [vmem:[%s196 + $0xa8] sm:$0xf]
        %v242 = vld [vmem:[%s196 + $0xac] sm:$0xf]
        %v243 = vld [vmem:[%s196 + $0xb0] sm:$0xf]
        %v244 = vld [vmem:[%s196 + $0xb4] sm:$0xf]
        %v245 = vld [vmem:[%s196 + $0xb8] sm:$0xf]
        %v246 = vld [vmem:[%s196 + $0xbc] sm:$0xf]
        %v247 = vld [vmem:[%s196 + $0xc0] sm:$0xf]
        %v248 = vld [vmem:[%s196 + $0xc4] sm:$0xf]
        %v249 = vld [vmem:[%s196 + $0xc8] sm:$0xf]
        %v250 = vld [vmem:[%s196 + $0xcc] sm:$0xf]
        %v251 = vld [vmem:[%s196 + $0xd0] sm:$0xf]
        %v252 = vld [vmem:[%s196 + $0xd4] sm:$0xf]
        %v253 = vld [vmem:[%s196 + $0xd8] sm:$0xf]
        %v254 = vld [vmem:[%s196 + $0xdc] sm:$0xf]
        %v255 = vld [vmem:[%s196 + $0xe0] sm:$0xf]
        %v256 = vld [vmem:[%s196 + $0xe4] sm:$0xf]
        %v257 = vld [vmem:[%s196 + $0xe8] sm:$0xf]
        %v258 = vld [vmem:[%s196 + $0xec] sm:$0xf]
        %v259 = vld [vmem:[%s196 + $0xf0] sm:$0xf]
        %v260 = vld [vmem:[%s196 + $0xf4] sm:$0xf]
        %v261 = vld [vmem:[%s196 + $0xf8] sm:$0xf]
        %v262 = vld [vmem:[%s196 + $0xfc] sm:$0xf]
        %v263 = vld [vmem:[%s196 + $0x100] sm:$0xf]
        %v264 = vld [vmem:[%s196 + $0x104] sm:$0xf]
        %v265 = vld [vmem:[%s196 + $0x108] sm:$0xf]
        %v266 = vld [vmem:[%s196 + $0x10c] sm:$0xf]
        %v267 = vld [vmem:[%s196 + $0x110] sm:$0xf]
        %v268 = vld [vmem:[%s196 + $0x114] sm:$0xf]
        %v269 = vld [vmem:[%s196 + $0x118] sm:$0xf]
        %v270 = vld [vmem:[%s196 + $0x11c] sm:$0xf]
        %v271 = vld [vmem:[%s196 + $0x120] sm:$0xf]
        %v272 = vld [vmem:[%s196 + $0x124] sm:$0xf]
        %v273 = vld [vmem:[%s196 + $0x128] sm:$0xf]
        %v274 = vld [vmem:[%s196 + $0x12c] sm:$0xf]
        %v275 = vld [vmem:[%s196 + $0x130] sm:$0xf]
        %v276 = vld [vmem:[%s196 + $0x134] sm:$0xf]
        %v277 = vld [vmem:[%s196 + $0x138] sm:$0xf]
        %v278 = vld [vmem:[%s196 + $0x13c] sm:$0xf]
        %v279 = vld [vmem:[%s196 + $0x140] sm:$0xf]
        %v280 = vld [vmem:[%s196 + $0x144] sm:$0xf]
        %v281 = vld [vmem:[%s196 + $0x148] sm:$0xf]
        %v282 = vld [vmem:[%s196 + $0x14c] sm:$0xf]
        %v283 = vld [vmem:[%s196 + $0x150] sm:$0xf]
        %v284 = vld [vmem:[%s196 + $0x154] sm:$0xf]
        %v285 = vld [vmem:[%s196 + $0x158] sm:$0xf]
        %v286 = vld [vmem:[%s196 + $0x15c] sm:$0xf]
        %v287 = vld [vmem:[%s196 + $0x160] sm:$0xf]
        %v288 = vld [vmem:[%s196 + $0x164] sm:$0xf]
        %v289 = vld [vmem:[%s196 + $0x168] sm:$0xf]
        %v290 = vld [vmem:[%s196 + $0x16c] sm:$0xf]
        %v291 = vld [vmem:[%s196 + $0x170] sm:$0xf]
        %v292 = vld [vmem:[%s196 + $0x174] sm:$0xf]
        %v293 = vld [vmem:[%s196 + $0x178] sm:$0xf]
        %v294 = vld [vmem:[%s196 + $0x17c] sm:$0xf]
        %v295 = vld [vmem:[%s196 + $0x180] sm:$0xf]
        %v296 = vld [vmem:[%s196 + $0x184] sm:$0xf]
        %v297 = vld [vmem:[%s196 + $0x188] sm:$0xf]
        %v298 = vld [vmem:[%s196 + $0x18c] sm:$0xf]
        %v299 = vld [vmem:[%s196 + $0x190] sm:$0xf]
        %v300 = vld [vmem:[%s196 + $0x194] sm:$0xf]
        %v301 = vld [vmem:[%s196 + $0x198] sm:$0xf]
        %v302 = vld [vmem:[%s196 + $0x19c] sm:$0xf]
        %v303 = vld [vmem:[%s196 + $0x1a0] sm:$0xf]
        %v304 = vld [vmem:[%s196 + $0x1a4] sm:$0xf]
        %v305 = vld [vmem:[%s196 + $0x1a8] sm:$0xf]
        %v306 = vld [vmem:[%s196 + $0x1ac] sm:$0xf]
        %v307 = vld [vmem:[%s196 + $0x1b0] sm:$0xf]
        %v308 = vld [vmem:[%s196 + $0x1b4] sm:$0xf]
        %v309 = vld [vmem:[%s196 + $0x1b8] sm:$0xf]
        %v310 = vld [vmem:[%s196 + $0x1bc] sm:$0xf]
        %v311 = vld [vmem:[%s196 + $0x1c0] sm:$0xf]
        %v312 = vld [vmem:[%s196 + $0x1c4] sm:$0xf]
        %v313 = vld [vmem:[%s196 + $0x1c8] sm:$0xf]
        %v314 = vld [vmem:[%s196 + $0x1cc] sm:$0xf]
        %v315 = vld [vmem:[%s196 + $0x1d0] sm:$0xf]
        %v316 = vld [vmem:[%s196 + $0x1d4] sm:$0xf]
        %v317 = vld [vmem:[%s196 + $0x1d8] sm:$0xf]
        %v318 = vld [vmem:[%s196 + $0x1dc] sm:$0xf]
        %v319 = vld [vmem:[%s196 + $0x1e0] sm:$0xf]
        %v320 = vld [vmem:[%s196 + $0x1e4] sm:$0xf]
        %v321 = vld [vmem:[%s196 + $0x1e8] sm:$0xf]
        %v322 = vld [vmem:[%s196 + $0x1ec] sm:$0xf]
        %v323 = vld [vmem:[%s196 + $0x1f0] sm:$0xf]
        %v324 = vld [vmem:[%s196 + $0x1f4] sm:$0xf]
        %v325 = vld [vmem:[%s196 + $0x1f8] sm:$0xf]
        %v326 = vld [vmem:[%s196 + $0x1fc] sm:$0xf]
        %v327 = vld [vmem:[%s196 + $0x200] sm:$0xf]
        %v328 = vld [vmem:[%s196 + $0x204] sm:$0xf]
        %v329 = vld [vmem:[%s196 + $0x208] sm:$0xf]
        %v330 = vld [vmem:[%s196 + $0x20c] sm:$0xf]
        %v331 = vld [vmem:[%s196 + $0x210] sm:$0xf]
        %v332 = vld [vmem:[%s196 + $0x214] sm:$0xf]
        %v333 = vld [vmem:[%s196 + $0x218] sm:$0xf]
        %v334 = vld [vmem:[%s196 + $0x21c] sm:$0xf]
        %v335 = vld [vmem:[%s196 + $0x220] sm:$0xf]
        %v336 = vld [vmem:[%s196 + $0x224] sm:$0xf]
        %v337 = vld [vmem:[%s196 + $0x228] sm:$0xf]
        %v338 = vld [vmem:[%s196 + $0x22c] sm:$0xf]
        %v339 = vld [vmem:[%s196 + $0x230] sm:$0xf]
        %v340 = vld [vmem:[%s196 + $0x234] sm:$0xf]
        %v341 = vld [vmem:[%s196 + $0x238] sm:$0xf]
        %v342 = vld [vmem:[%s196 + $0x23c] sm:$0xf]
        %v343 = vld [vmem:[%s196 + $0x240] sm:$0xf]
        %v344 = vld [vmem:[%s196 + $0x244] sm:$0xf]
        %v345 = vld [vmem:[%s196 + $0x248] sm:$0xf]
        %v346 = vld [vmem:[%s196 + $0x24c] sm:$0xf]
        %v347 = vld [vmem:[%s196 + $0x250] sm:$0xf]
        %v348 = vld [vmem:[%s196 + $0x254] sm:$0xf]
        %v349 = vld [vmem:[%s196 + $0x258] sm:$0xf]
        %v350 = vld [vmem:[%s196 + $0x25c] sm:$0xf]
        %v351 = vld [vmem:[%s196 + $0x260] sm:$0xf]
        %v352 = vld [vmem:[%s196 + $0x264] sm:$0xf]
        %v353 = vld [vmem:[%s196 + $0x268] sm:$0xf]
        %v354 = vld [vmem:[%s196 + $0x26c] sm:$0xf]
        %v355 = vld [vmem:[%s196 + $0x270] sm:$0xf]
        %v356 = vld [vmem:[%s196 + $0x274] sm:$0xf]
        %v357 = vld [vmem:[%s196 + $0x278] sm:$0xf]
        %v358 = vld [vmem:[%s196 + $0x27c] sm:$0xf]
        %v359 = vld [vmem:[%s196 + $0x280] sm:$0xf]
        %v360 = vld [vmem:[%s196 + $0x284] sm:$0xf]
        %v361 = vld [vmem:[%s196 + $0x288] sm:$0xf]
        %v362 = vld [vmem:[%s196 + $0x28c] sm:$0xf]
        %v363 = vld [vmem:[%s196 + $0x290] sm:$0xf]
        %v364 = vld [vmem:[%s196 + $0x294] sm:$0xf]
        %v365 = vld [vmem:[%s196 + $0x298] sm:$0xf]
        %v366 = vld [vmem:[%s196 + $0x29c] sm:$0xf]
        %v367 = vld [vmem:[%s196 + $0x2a0] sm:$0xf]
        %v368 = vld [vmem:[%s196 + $0x2a4] sm:$0xf]
        %v369 = vld [vmem:[%s196 + $0x2a8] sm:$0xf]
        %v370 = vld [vmem:[%s196 + $0x2ac] sm:$0xf]
        %v371 = vld [vmem:[%s196 + $0x2b0] sm:$0xf]
        %v372 = vld [vmem:[%s196 + $0x2b4] sm:$0xf]
        %v373 = vld [vmem:[%s196 + $0x2b8] sm:$0xf]
        %v374 = vld [vmem:[%s196 + $0x2bc] sm:$0xf]
        %v375 = vld [vmem:[%s196 + $0x2c0] sm:$0xf]
        %v376 = vld [vmem:[%s196 + $0x2c4] sm:$0xf]
        %v377 = vld [vmem:[%s196 + $0x2c8] sm:$0xf]
        %v378 = vld [vmem:[%s196 + $0x2cc] sm:$0xf]
        %v379 = vld [vmem:[%s196 + $0x2d0] sm:$0xf]
        %v380 = vld [vmem:[%s196 + $0x2d4] sm:$0xf]
        %v381 = vld [vmem:[%s196 + $0x2d8] sm:$0xf]
        %v382 = vld [vmem:[%s196 + $0x2dc] sm:$0xf]
        %v383 = vld [vmem:[%s196 + $0x2e0] sm:$0xf]
        %v384 = vld [vmem:[%s196 + $0x2e4] sm:$0xf]
        %v385 = vld [vmem:[%s196 + $0x2e8] sm:$0xf]
        %v386 = vld [vmem:[%s196 + $0x2ec] sm:$0xf]
        %v387 = vld [vmem:[%s196 + $0x2f0] sm:$0xf]
        %v388 = vld [vmem:[%s196 + $0x2f4] sm:$0xf]
        %v389 = vld [vmem:[%s196 + $0x2f8] sm:$0xf]
        %v390 = vld [vmem:[%s196 + $0x2fc] sm:$0xf]
        %v391 = vld [vmem:[%s196 + $0x300] sm:$0xf]
        %v392 = vld [vmem:[%s196 + $0x304] sm:$0xf]
        %v393 = vld [vmem:[%s196 + $0x308] sm:$0xf]
        %v394 = vld [vmem:[%s196 + $0x30c] sm:$0xf]
        %v395 = vld [vmem:[%s196 + $0x310] sm:$0xf]
        %v396 = vld [vmem:[%s196 + $0x314] sm:$0xf]
        %v397 = vld [vmem:[%s196 + $0x318] sm:$0xf]
        %v398 = vld [vmem:[%s196 + $0x31c] sm:$0xf]
        %v399 = vld [vmem:[%s196 + $0x320] sm:$0xf]
        %v400 = vld [vmem:[%s196 + $0x324] sm:$0xf]
        %v401 = vld [vmem:[%s196 + $0x328] sm:$0xf]
        %v402 = vld [vmem:[%s196 + $0x32c] sm:$0xf]
        %v403 = vld [vmem:[%s196 + $0x330] sm:$0xf]
        %v404 = vld [vmem:[%s196 + $0x334] sm:$0xf]
        %v405 = vld [vmem:[%s196 + $0x338] sm:$0xf]
        %v406 = vld [vmem:[%s196 + $0x33c] sm:$0xf]
        %v407 = vld [vmem:[%s196 + $0x340] sm:$0xf]
        %v408 = vld [vmem:[%s196 + $0x344] sm:$0xf]
        %v409 = vld [vmem:[%s196 + $0x348] sm:$0xf]
        %v410 = vld [vmem:[%s196 + $0x34c] sm:$0xf]
        %v411 = vld [vmem:[%s196 + $0x350] sm:$0xf]
        %v412 = vld [vmem:[%s196 + $0x354] sm:$0xf]
        %v413 = vld [vmem:[%s196 + $0x358] sm:$0xf]
        %v414 = vld [vmem:[%s196 + $0x35c] sm:$0xf]
        %v415 = vld [vmem:[%s196 + $0x360] sm:$0xf]
        %v416 = vld [vmem:[%s196 + $0x364] sm:$0xf]
        %v417 = vld [vmem:[%s196 + $0x368] sm:$0xf]
        %v418 = vld [vmem:[%s196 + $0x36c] sm:$0xf]
        %v419 = vld [vmem:[%s196 + $0x370] sm:$0xf]
        %v420 = vld [vmem:[%s196 + $0x374] sm:$0xf]
        %v421 = vld [vmem:[%s196 + $0x378] sm:$0xf]
        %v422 = vld [vmem:[%s196 + $0x37c] sm:$0xf]
        %v423 = vld [vmem:[%s196 + $0x380] sm:$0xf]
        %v424 = vld [vmem:[%s196 + $0x384] sm:$0xf]
        %v425 = vld [vmem:[%s196 + $0x388] sm:$0xf]
        %v426 = vld [vmem:[%s196 + $0x38c] sm:$0xf]
        %v427 = vld [vmem:[%s196 + $0x390] sm:$0xf]
        %v428 = vld [vmem:[%s196 + $0x394] sm:$0xf]
        %v429 = vld [vmem:[%s196 + $0x398] sm:$0xf]
        %v430 = vld [vmem:[%s196 + $0x39c] sm:$0xf]
        %v431 = vld [vmem:[%s196 + $0x3a0] sm:$0xf]
        %v432 = vld [vmem:[%s196 + $0x3a4] sm:$0xf]
        %v433 = vld [vmem:[%s196 + $0x3a8] sm:$0xf]
        %v434 = vld [vmem:[%s196 + $0x3ac] sm:$0xf]
        %v435 = vld [vmem:[%s196 + $0x3b0] sm:$0xf]
        %v436 = vld [vmem:[%s196 + $0x3b4] sm:$0xf]
        %v437 = vld [vmem:[%s196 + $0x3b8] sm:$0xf]
        %v438 = vld [vmem:[%s196 + $0x3bc] sm:$0xf]
        %v439 = vld [vmem:[%s196 + $0x3c0] sm:$0xf]
        %v440 = vld [vmem:[%s196 + $0x3c4] sm:$0xf]
        %v441 = vld [vmem:[%s196 + $0x3c8] sm:$0xf]
        %v442 = vld [vmem:[%s196 + $0x3cc] sm:$0xf]
        %v443 = vld [vmem:[%s196 + $0x3d0] sm:$0xf]
        %v444 = vld [vmem:[%s196 + $0x3d4] sm:$0xf]
        %v445 = vld [vmem:[%s196 + $0x3d8] sm:$0xf]
        %v446 = vld [vmem:[%s196 + $0x3dc] sm:$0xf]
        %v447 = vld [vmem:[%s196 + $0x3e0] sm:$0xf]
        %v448 = vld [vmem:[%s196 + $0x3e4] sm:$0xf]
        %v449 = vld [vmem:[%s196 + $0x3e8] sm:$0xf]
        %v450 = vld [vmem:[%s196 + $0x3ec] sm:$0xf]
        %v451 = vld [vmem:[%s196 + $0x3f0] sm:$0xf]
        %v452 = vld [vmem:[%s196 + $0x3f4] sm:$0xf]
        %v453 = vld [vmem:[%s196 + $0x3f8] sm:$0xf]
        %v454 = vld [vmem:[%s196 + $0x3fc] sm:$0xf]
        %v455 = vunpack.c.l.bf16 %v199
        %v456 = vunpack.c.l.bf16 %v200
        %v457 = vunpack.c.l.bf16 %v201
        %v458 = vunpack.c.l.bf16 %v202
        %v459 = vunpack.c.l.bf16 %v203
        %v460 = vunpack.c.l.bf16 %v204
        %v461 = vunpack.c.l.bf16 %v205
        %v462 = vunpack.c.l.bf16 %v206
        %v463 = vunpack.c.l.bf16 %v207
        %v464 = vunpack.c.l.bf16 %v208
        %v465 = vunpack.c.l.bf16 %v209
        %v466 = vunpack.c.l.bf16 %v210
        %v467 = vunpack.c.l.bf16 %v211
        %v468 = vunpack.c.l.bf16 %v212
        %v469 = vunpack.c.l.bf16 %v213
        %v470 = vunpack.c.l.bf16 %v214
        %v471 = vunpack.c.l.bf16 %v215
        %v472 = vunpack.c.l.bf16 %v216
        %v473 = vunpack.c.l.bf16 %v217
        %v474 = vunpack.c.l.bf16 %v218
        %v475 = vunpack.c.l.bf16 %v219
        %v476 = vunpack.c.l.bf16 %v220
        %v477 = vunpack.c.l.bf16 %v221
        %v478 = vunpack.c.l.bf16 %v222
        %v479 = vunpack.c.l.bf16 %v223
        %v480 = vunpack.c.l.bf16 %v224
        %v481 = vunpack.c.l.bf16 %v225
        %v482 = vunpack.c.l.bf16 %v226
        %v483 = vunpack.c.l.bf16 %v227
        %v484 = vunpack.c.l.bf16 %v228
        %v485 = vunpack.c.l.bf16 %v229
        %v486 = vunpack.c.l.bf16 %v230
        %v487 = vunpack.c.l.bf16 %v231
        %v488 = vunpack.c.l.bf16 %v232
        %v489 = vunpack.c.l.bf16 %v233
        %v490 = vunpack.c.l.bf16 %v234
        %v491 = vunpack.c.l.bf16 %v235
        %v492 = vunpack.c.l.bf16 %v236
        %v493 = vunpack.c.l.bf16 %v237
        %v494 = vunpack.c.l.bf16 %v238
        %v495 = vunpack.c.l.bf16 %v239
        %v496 = vunpack.c.l.bf16 %v240
        %v497 = vunpack.c.l.bf16 %v241
        %v498 = vunpack.c.l.bf16 %v242
        %v499 = vunpack.c.l.bf16 %v243
        %v500 = vunpack.c.l.bf16 %v244
        %v501 = vunpack.c.l.bf16 %v245
        %v502 = vunpack.c.l.bf16 %v246
        %v503 = vunpack.c.l.bf16 %v247
        %v504 = vunpack.c.l.bf16 %v248
        %v505 = vunpack.c.l.bf16 %v249
        %v506 = vunpack.c.l.bf16 %v250
        %v507 = vunpack.c.l.bf16 %v251
        %v508 = vunpack.c.l.bf16 %v252
        %v509 = vunpack.c.l.bf16 %v253
        %v510 = vunpack.c.l.bf16 %v254
        %v511 = vunpack.c.l.bf16 %v255
        %v512 = vunpack.c.l.bf16 %v256
        %v513 = vunpack.c.l.bf16 %v257
        %v514 = vunpack.c.l.bf16 %v258
        %v515 = vunpack.c.l.bf16 %v259
        %v516 = vunpack.c.l.bf16 %v260
        %v517 = vunpack.c.l.bf16 %v261
        %v518 = vunpack.c.l.bf16 %v262
        %v519 = vunpack.c.l.bf16 %v263
        %v520 = vunpack.c.l.bf16 %v264
        %v521 = vunpack.c.l.bf16 %v265
        %v522 = vunpack.c.l.bf16 %v266
        %v523 = vunpack.c.l.bf16 %v267
        %v524 = vunpack.c.l.bf16 %v268
        %v525 = vunpack.c.l.bf16 %v269
        %v526 = vunpack.c.l.bf16 %v270
        %v527 = vunpack.c.l.bf16 %v271
        %v528 = vunpack.c.l.bf16 %v272
        %v529 = vunpack.c.l.bf16 %v273
        %v530 = vunpack.c.l.bf16 %v274
        %v531 = vunpack.c.l.bf16 %v275
        %v532 = vunpack.c.l.bf16 %v276
        %v533 = vunpack.c.l.bf16 %v277
        %v534 = vunpack.c.l.bf16 %v278
        %v535 = vunpack.c.l.bf16 %v279
        %v536 = vunpack.c.l.bf16 %v280
        %v537 = vunpack.c.l.bf16 %v281
        %v538 = vunpack.c.l.bf16 %v282
        %v539 = vunpack.c.l.bf16 %v283
        %v540 = vunpack.c.l.bf16 %v284
        %v541 = vunpack.c.l.bf16 %v285
        %v542 = vunpack.c.l.bf16 %v286
        %v543 = vunpack.c.l.bf16 %v287
        %v544 = vunpack.c.l.bf16 %v288
        %v545 = vunpack.c.l.bf16 %v289
        %v546 = vunpack.c.l.bf16 %v290
        %v547 = vunpack.c.l.bf16 %v291
        %v548 = vunpack.c.l.bf16 %v292
        %v549 = vunpack.c.l.bf16 %v293
        %v550 = vunpack.c.l.bf16 %v294
        %v551 = vunpack.c.l.bf16 %v295
        %v552 = vunpack.c.l.bf16 %v296
        %v553 = vunpack.c.l.bf16 %v297
        %v554 = vunpack.c.l.bf16 %v298
        %v555 = vunpack.c.l.bf16 %v299
        %v556 = vunpack.c.l.bf16 %v300
        %v557 = vunpack.c.l.bf16 %v301
        %v558 = vunpack.c.l.bf16 %v302
        %v559 = vunpack.c.l.bf16 %v303
        %v560 = vunpack.c.l.bf16 %v304
        %v561 = vunpack.c.l.bf16 %v305
        %v562 = vunpack.c.l.bf16 %v306
        %v563 = vunpack.c.l.bf16 %v307
        %v564 = vunpack.c.l.bf16 %v308
        %v565 = vunpack.c.l.bf16 %v309
        %v566 = vunpack.c.l.bf16 %v310
        %v567 = vunpack.c.l.bf16 %v311
        %v568 = vunpack.c.l.bf16 %v312
        %v569 = vunpack.c.l.bf16 %v313
        %v570 = vunpack.c.l.bf16 %v314
        %v571 = vunpack.c.l.bf16 %v315
        %v572 = vunpack.c.l.bf16 %v316
        %v573 = vunpack.c.l.bf16 %v317
        %v574 = vunpack.c.l.bf16 %v318
        %v575 = vunpack.c.l.bf16 %v319
        %v576 = vunpack.c.l.bf16 %v320
        %v577 = vunpack.c.l.bf16 %v321
        %v578 = vunpack.c.l.bf16 %v322
        %v579 = vunpack.c.l.bf16 %v323
        %v580 = vunpack.c.l.bf16 %v324
        %v581 = vunpack.c.l.bf16 %v325
        %v582 = vunpack.c.l.bf16 %v326
        %v583 = vunpack.c.l.bf16 %v327
        %v584 = vunpack.c.l.bf16 %v328
        %v585 = vunpack.c.l.bf16 %v329
        %v586 = vunpack.c.l.bf16 %v330
        %v587 = vunpack.c.l.bf16 %v331
        %v588 = vunpack.c.l.bf16 %v332
        %v589 = vunpack.c.l.bf16 %v333
        %v590 = vunpack.c.l.bf16 %v334
        %v591 = vunpack.c.l.bf16 %v335
        %v592 = vunpack.c.l.bf16 %v336
        %v593 = vunpack.c.l.bf16 %v337
        %v594 = vunpack.c.l.bf16 %v338
        %v595 = vunpack.c.l.bf16 %v339
        %v596 = vunpack.c.l.bf16 %v340
        %v597 = vunpack.c.l.bf16 %v341
        %v598 = vunpack.c.l.bf16 %v342
        %v599 = vunpack.c.l.bf16 %v343
        %v600 = vunpack.c.l.bf16 %v344
        %v601 = vunpack.c.l.bf16 %v345
        %v602 = vunpack.c.l.bf16 %v346
        %v603 = vunpack.c.l.bf16 %v347
        %v604 = vunpack.c.l.bf16 %v348
        %v605 = vunpack.c.l.bf16 %v349
        %v606 = vunpack.c.l.bf16 %v350
        %v607 = vunpack.c.l.bf16 %v351
        %v608 = vunpack.c.l.bf16 %v352
        %v609 = vunpack.c.l.bf16 %v353
        %v610 = vunpack.c.l.bf16 %v354
        %v611 = vunpack.c.l.bf16 %v355
        %v612 = vunpack.c.l.bf16 %v356
        %v613 = vunpack.c.l.bf16 %v357
        %v614 = vunpack.c.l.bf16 %v358
        %v615 = vunpack.c.l.bf16 %v359
        %v616 = vunpack.c.l.bf16 %v360
        %v617 = vunpack.c.l.bf16 %v361
        %v618 = vunpack.c.l.bf16 %v362
        %v619 = vunpack.c.l.bf16 %v363
        %v620 = vunpack.c.l.bf16 %v364
        %v621 = vunpack.c.l.bf16 %v365
        %v622 = vunpack.c.l.bf16 %v366
        %v623 = vunpack.c.l.bf16 %v367
        %v624 = vunpack.c.l.bf16 %v368
        %v625 = vunpack.c.l.bf16 %v369
        %v626 = vunpack.c.l.bf16 %v370
        %v627 = vunpack.c.l.bf16 %v371
        %v628 = vunpack.c.l.bf16 %v372
        %v629 = vunpack.c.l.bf16 %v373
        %v630 = vunpack.c.l.bf16 %v374
        %v631 = vunpack.c.l.bf16 %v375
        %v632 = vunpack.c.l.bf16 %v376
        %v633 = vunpack.c.l.bf16 %v377
        %v634 = vunpack.c.l.bf16 %v378
        %v635 = vunpack.c.l.bf16 %v379
        %v636 = vunpack.c.l.bf16 %v380
        %v637 = vunpack.c.l.bf16 %v381
        %v638 = vunpack.c.l.bf16 %v382
        %v639 = vunpack.c.l.bf16 %v383
        %v640 = vunpack.c.l.bf16 %v384
        %v641 = vunpack.c.l.bf16 %v385
        %v642 = vunpack.c.l.bf16 %v386
        %v643 = vunpack.c.l.bf16 %v387
        %v644 = vunpack.c.l.bf16 %v388
        %v645 = vunpack.c.l.bf16 %v389
        %v646 = vunpack.c.l.bf16 %v390
        %v647 = vunpack.c.l.bf16 %v391
        %v648 = vunpack.c.l.bf16 %v392
        %v649 = vunpack.c.l.bf16 %v393
        %v650 = vunpack.c.l.bf16 %v394
        %v651 = vunpack.c.l.bf16 %v395
        %v652 = vunpack.c.l.bf16 %v396
        %v653 = vunpack.c.l.bf16 %v397
        %v654 = vunpack.c.l.bf16 %v398
        %v655 = vunpack.c.l.bf16 %v399
        %v656 = vunpack.c.l.bf16 %v400
        %v657 = vunpack.c.l.bf16 %v401
        %v658 = vunpack.c.l.bf16 %v402
        %v659 = vunpack.c.l.bf16 %v403
        %v660 = vunpack.c.l.bf16 %v404
        %v661 = vunpack.c.l.bf16 %v405
        %v662 = vunpack.c.l.bf16 %v406
        %v663 = vunpack.c.l.bf16 %v407
        %v664 = vunpack.c.l.bf16 %v408
        %v665 = vunpack.c.l.bf16 %v409
        %v666 = vunpack.c.l.bf16 %v410
        %v667 = vunpack.c.l.bf16 %v411
        %v668 = vunpack.c.l.bf16 %v412
        %v669 = vunpack.c.l.bf16 %v413
        %v670 = vunpack.c.l.bf16 %v414
        %v671 = vunpack.c.l.bf16 %v415
        %v672 = vunpack.c.l.bf16 %v416
        %v673 = vunpack.c.l.bf16 %v417
        %v674 = vunpack.c.l.bf16 %v418
        %v675 = vunpack.c.l.bf16 %v419
        %v676 = vunpack.c.l.bf16 %v420
        %v677 = vunpack.c.l.bf16 %v421
        %v678 = vunpack.c.l.bf16 %v422
        %v679 = vunpack.c.l.bf16 %v423
        %v680 = vunpack.c.l.bf16 %v424
        %v681 = vunpack.c.l.bf16 %v425
        %v682 = vunpack.c.l.bf16 %v426
        %v683 = vunpack.c.l.bf16 %v427
        %v684 = vunpack.c.l.bf16 %v428
        %v685 = vunpack.c.l.bf16 %v429
        %v686 = vunpack.c.l.bf16 %v430
        %v687 = vunpack.c.l.bf16 %v431
        %v688 = vunpack.c.l.bf16 %v432
        %v689 = vunpack.c.l.bf16 %v433
        %v690 = vunpack.c.l.bf16 %v434
        %v691 = vunpack.c.l.bf16 %v435
        %v692 = vunpack.c.l.bf16 %v436
        %v693 = vunpack.c.l.bf16 %v437
        %v694 = vunpack.c.l.bf16 %v438
        %v695 = vunpack.c.l.bf16 %v439
        %v696 = vunpack.c.l.bf16 %v440
        %v697 = vunpack.c.l.bf16 %v441
        %v698 = vunpack.c.l.bf16 %v442
        %v699 = vunpack.c.l.bf16 %v443
        %v700 = vunpack.c.l.bf16 %v444
        %v701 = vunpack.c.l.bf16 %v445
        %v702 = vunpack.c.l.bf16 %v446
        %v703 = vunpack.c.l.bf16 %v447
        %v704 = vunpack.c.l.bf16 %v448
        %v705 = vunpack.c.l.bf16 %v449
        %v706 = vunpack.c.l.bf16 %v450
        %v707 = vunpack.c.l.bf16 %v451
        %v708 = vunpack.c.l.bf16 %v452
        %v709 = vunpack.c.l.bf16 %v453
        %v710 = vunpack.c.l.bf16 %v454
        %v711 = vld [vmem:[%s1] sm:$0x1]
        %v713 = vperm.slane %v711, 0
        %v715 = vmul.f32 %v455, %v713
        %v716 = vmul.f32 %v456, %v713
        %v717 = vmul.f32 %v457, %v713
        %v718 = vmul.f32 %v458, %v713
        %v719 = vmul.f32 %v459, %v713
        %v720 = vmul.f32 %v460, %v713
        %v721 = vmul.f32 %v461, %v713
        %v722 = vmul.f32 %v462, %v713
        %v723 = vmul.f32 %v463, %v713
        %v724 = vmul.f32 %v464, %v713
        %v725 = vmul.f32 %v465, %v713
        %v726 = vmul.f32 %v466, %v713
        %v727 = vmul.f32 %v467, %v713
        %v728 = vmul.f32 %v468, %v713
        %v729 = vmul.f32 %v469, %v713
        %v730 = vmul.f32 %v470, %v713
        %v731 = vmul.f32 %v471, %v713
        %v732 = vmul.f32 %v472, %v713
        %v733 = vmul.f32 %v473, %v713
        %v734 = vmul.f32 %v474, %v713
        %v735 = vmul.f32 %v475, %v713
        %v736 = vmul.f32 %v476, %v713
        %v737 = vmul.f32 %v477, %v713
        %v738 = vmul.f32 %v478, %v713
        %v739 = vmul.f32 %v479, %v713
        %v740 = vmul.f32 %v480, %v713
        %v741 = vmul.f32 %v481, %v713
        %v742 = vmul.f32 %v482, %v713
        %v743 = vmul.f32 %v483, %v713
        %v744 = vmul.f32 %v484, %v713
        %v745 = vmul.f32 %v485, %v713
        %v746 = vmul.f32 %v486, %v713
        %v747 = vmul.f32 %v487, %v713
        %v748 = vmul.f32 %v488, %v713
        %v749 = vmul.f32 %v489, %v713
        %v750 = vmul.f32 %v490, %v713
        %v751 = vmul.f32 %v491, %v713
        %v752 = vmul.f32 %v492, %v713
        %v753 = vmul.f32 %v493, %v713
        %v754 = vmul.f32 %v494, %v713
        %v755 = vmul.f32 %v495, %v713
        %v756 = vmul.f32 %v496, %v713
        %v757 = vmul.f32 %v497, %v713
        %v758 = vmul.f32 %v498, %v713
        %v759 = vmul.f32 %v499, %v713
        %v760 = vmul.f32 %v500, %v713
        %v761 = vmul.f32 %v501, %v713
        %v762 = vmul.f32 %v502, %v713
        %v763 = vmul.f32 %v503, %v713
        %v764 = vmul.f32 %v504, %v713
        %v765 = vmul.f32 %v505, %v713
        %v766 = vmul.f32 %v506, %v713
        %v767 = vmul.f32 %v507, %v713
        %v768 = vmul.f32 %v508, %v713
        %v769 = vmul.f32 %v509, %v713
        %v770 = vmul.f32 %v510, %v713
        %v771 = vmul.f32 %v511, %v713
        %v772 = vmul.f32 %v512, %v713
        %v773 = vmul.f32 %v513, %v713
        %v774 = vmul.f32 %v514, %v713
        %v775 = vmul.f32 %v515, %v713
        %v776 = vmul.f32 %v516, %v713
        %v777 = vmul.f32 %v517, %v713
        %v778 = vmul.f32 %v518, %v713
        %v779 = vmul.f32 %v519, %v713
        %v780 = vmul.f32 %v520, %v713
        %v781 = vmul.f32 %v521, %v713
        %v782 = vmul.f32 %v522, %v713
        %v783 = vmul.f32 %v523, %v713
        %v784 = vmul.f32 %v524, %v713
        %v785 = vmul.f32 %v525, %v713
        %v786 = vmul.f32 %v526, %v713
        %v787 = vmul.f32 %v527, %v713
        %v788 = vmul.f32 %v528, %v713
        %v789 = vmul.f32 %v529, %v713
        %v790 = vmul.f32 %v530, %v713
        %v791 = vmul.f32 %v531, %v713
        %v792 = vmul.f32 %v532, %v713
        %v793 = vmul.f32 %v533, %v713
        %v794 = vmul.f32 %v534, %v713
        %v795 = vmul.f32 %v535, %v713
        %v796 = vmul.f32 %v536, %v713
        %v797 = vmul.f32 %v537, %v713
        %v798 = vmul.f32 %v538, %v713
        %v799 = vmul.f32 %v539, %v713
        %v800 = vmul.f32 %v540, %v713
        %v801 = vmul.f32 %v541, %v713
        %v802 = vmul.f32 %v542, %v713
        %v803 = vmul.f32 %v543, %v713
        %v804 = vmul.f32 %v544, %v713
        %v805 = vmul.f32 %v545, %v713
        %v806 = vmul.f32 %v546, %v713
        %v807 = vmul.f32 %v547, %v713
        %v808 = vmul.f32 %v548, %v713
        %v809 = vmul.f32 %v549, %v713
        %v810 = vmul.f32 %v550, %v713
        %v811 = vmul.f32 %v551, %v713
        %v812 = vmul.f32 %v552, %v713
        %v813 = vmul.f32 %v553, %v713
        %v814 = vmul.f32 %v554, %v713
        %v815 = vmul.f32 %v555, %v713
        %v816 = vmul.f32 %v556, %v713
        %v817 = vmul.f32 %v557, %v713
        %v818 = vmul.f32 %v558, %v713
        %v819 = vmul.f32 %v559, %v713
        %v820 = vmul.f32 %v560, %v713
        %v821 = vmul.f32 %v561, %v713
        %v822 = vmul.f32 %v562, %v713
        %v823 = vmul.f32 %v563, %v713
        %v824 = vmul.f32 %v564, %v713
        %v825 = vmul.f32 %v565, %v713
        %v826 = vmul.f32 %v566, %v713
        %v827 = vmul.f32 %v567, %v713
        %v828 = vmul.f32 %v568, %v713
        %v829 = vmul.f32 %v569, %v713
        %v830 = vmul.f32 %v570, %v713
        %v831 = vmul.f32 %v571, %v713
        %v832 = vmul.f32 %v572, %v713
        %v833 = vmul.f32 %v573, %v713
        %v834 = vmul.f32 %v574, %v713
        %v835 = vmul.f32 %v575, %v713
        %v836 = vmul.f32 %v576, %v713
        %v837 = vmul.f32 %v577, %v713
        %v838 = vmul.f32 %v578, %v713
        %v839 = vmul.f32 %v579, %v713
        %v840 = vmul.f32 %v580, %v713
        %v841 = vmul.f32 %v581, %v713
        %v842 = vmul.f32 %v582, %v713
        %v843 = vmul.f32 %v583, %v713
        %v844 = vmul.f32 %v584, %v713
        %v845 = vmul.f32 %v585, %v713
        %v846 = vmul.f32 %v586, %v713
        %v847 = vmul.f32 %v587, %v713
        %v848 = vmul.f32 %v588, %v713
        %v849 = vmul.f32 %v589, %v713
        %v850 = vmul.f32 %v590, %v713
        %v851 = vmul.f32 %v591, %v713
        %v852 = vmul.f32 %v592, %v713
        %v853 = vmul.f32 %v593, %v713
        %v854 = vmul.f32 %v594, %v713
        %v855 = vmul.f32 %v595, %v713
        %v856 = vmul.f32 %v596, %v713
        %v857 = vmul.f32 %v597, %v713
        %v858 = vmul.f32 %v598, %v713
        %v859 = vmul.f32 %v599, %v713
        %v860 = vmul.f32 %v600, %v713
        %v861 = vmul.f32 %v601, %v713
        %v862 = vmul.f32 %v602, %v713
        %v863 = vmul.f32 %v603, %v713
        %v864 = vmul.f32 %v604, %v713
        %v865 = vmul.f32 %v605, %v713
        %v866 = vmul.f32 %v606, %v713
        %v867 = vmul.f32 %v607, %v713
        %v868 = vmul.f32 %v608, %v713
        %v869 = vmul.f32 %v609, %v713
        %v870 = vmul.f32 %v610, %v713
        %v871 = vmul.f32 %v611, %v713
        %v872 = vmul.f32 %v612, %v713
        %v873 = vmul.f32 %v613, %v713
        %v874 = vmul.f32 %v614, %v713
        %v875 = vmul.f32 %v615, %v713
        %v876 = vmul.f32 %v616, %v713
        %v877 = vmul.f32 %v617, %v713
        %v878 = vmul.f32 %v618, %v713
        %v879 = vmul.f32 %v619, %v713
        %v880 = vmul.f32 %v620, %v713
        %v881 = vmul.f32 %v621, %v713
        %v882 = vmul.f32 %v622, %v713
        %v883 = vmul.f32 %v623, %v713
        %v884 = vmul.f32 %v624, %v713
        %v885 = vmul.f32 %v625, %v713
        %v886 = vmul.f32 %v626, %v713
        %v887 = vmul.f32 %v627, %v713
        %v888 = vmul.f32 %v628, %v713
        %v889 = vmul.f32 %v629, %v713
        %v890 = vmul.f32 %v630, %v713
        %v891 = vmul.f32 %v631, %v713
        %v892 = vmul.f32 %v632, %v713
        %v893 = vmul.f32 %v633, %v713
        %v894 = vmul.f32 %v634, %v713
        %v895 = vmul.f32 %v635, %v713
        %v896 = vmul.f32 %v636, %v713
        %v897 = vmul.f32 %v637, %v713
        %v898 = vmul.f32 %v638, %v713
        %v899 = vmul.f32 %v639, %v713
        %v900 = vmul.f32 %v640, %v713
        %v901 = vmul.f32 %v641, %v713
        %v902 = vmul.f32 %v642, %v713
        %v903 = vmul.f32 %v643, %v713
        %v904 = vmul.f32 %v644, %v713
        %v905 = vmul.f32 %v645, %v713
        %v906 = vmul.f32 %v646, %v713
        %v907 = vmul.f32 %v647, %v713
        %v908 = vmul.f32 %v648, %v713
        %v909 = vmul.f32 %v649, %v713
        %v910 = vmul.f32 %v650, %v713
        %v911 = vmul.f32 %v651, %v713
        %v912 = vmul.f32 %v652, %v713
        %v913 = vmul.f32 %v653, %v713
        %v914 = vmul.f32 %v654, %v713
        %v915 = vmul.f32 %v655, %v713
        %v916 = vmul.f32 %v656, %v713
        %v917 = vmul.f32 %v657, %v713
        %v918 = vmul.f32 %v658, %v713
        %v919 = vmul.f32 %v659, %v713
        %v920 = vmul.f32 %v660, %v713
        %v921 = vmul.f32 %v661, %v713
        %v922 = vmul.f32 %v662, %v713
        %v923 = vmul.f32 %v663, %v713
        %v924 = vmul.f32 %v664, %v713
        %v925 = vmul.f32 %v665, %v713
        %v926 = vmul.f32 %v666, %v713
        %v927 = vmul.f32 %v667, %v713
        %v928 = vmul.f32 %v668, %v713
        %v929 = vmul.f32 %v669, %v713
        %v930 = vmul.f32 %v670, %v713
        %v931 = vmul.f32 %v671, %v713
        %v932 = vmul.f32 %v672, %v713
        %v933 = vmul.f32 %v673, %v713
        %v934 = vmul.f32 %v674, %v713
        %v935 = vmul.f32 %v675, %v713
        %v936 = vmul.f32 %v676, %v713
        %v937 = vmul.f32 %v677, %v713
        %v938 = vmul.f32 %v678, %v713
        %v939 = vmul.f32 %v679, %v713
        %v940 = vmul.f32 %v680, %v713
        %v941 = vmul.f32 %v681, %v713
        %v942 = vmul.f32 %v682, %v713
        %v943 = vmul.f32 %v683, %v713
        %v944 = vmul.f32 %v684, %v713
        %v945 = vmul.f32 %v685, %v713
        %v946 = vmul.f32 %v686, %v713
        %v947 = vmul.f32 %v687, %v713
        %v948 = vmul.f32 %v688, %v713
        %v949 = vmul.f32 %v689, %v713
        %v950 = vmul.f32 %v690, %v713
        %v951 = vmul.f32 %v691, %v713
        %v952 = vmul.f32 %v692, %v713
        %v953 = vmul.f32 %v693, %v713
        %v954 = vmul.f32 %v694, %v713
        %v955 = vmul.f32 %v695, %v713
        %v956 = vmul.f32 %v696, %v713
        %v957 = vmul.f32 %v697, %v713
        %v958 = vmul.f32 %v698, %v713
        %v959 = vmul.f32 %v699, %v713
        %v960 = vmul.f32 %v700, %v713
        %v961 = vmul.f32 %v701, %v713
        %v962 = vmul.f32 %v702, %v713
        %v963 = vmul.f32 %v703, %v713
        %v964 = vmul.f32 %v704, %v713
        %v965 = vmul.f32 %v705, %v713
        %v966 = vmul.f32 %v706, %v713
        %v967 = vmul.f32 %v707, %v713
        %v968 = vmul.f32 %v708, %v713
        %v969 = vmul.f32 %v709, %v713
        %v970 = vmul.f32 %v710, %v713
        %v971 = vld [vmem:[%s2] sm:$0x1]
        %v973 = vperm.slane %v971, 0
        %v975 = vadd.f32 %v715, %v973
        %v976 = vadd.f32 %v716, %v973
        %v977 = vadd.f32 %v717, %v973
        %v978 = vadd.f32 %v718, %v973
        %v979 = vadd.f32 %v719, %v973
        %v980 = vadd.f32 %v720, %v973
        %v981 = vadd.f32 %v721, %v973
        %v982 = vadd.f32 %v722, %v973
        %v983 = vadd.f32 %v723, %v973
        %v984 = vadd.f32 %v724, %v973
        %v985 = vadd.f32 %v725, %v973
        %v986 = vadd.f32 %v726, %v973
        %v987 = vadd.f32 %v727, %v973
        %v988 = vadd.f32 %v728, %v973
        %v989 = vadd.f32 %v729, %v973
        %v990 = vadd.f32 %v730, %v973
        %v991 = vadd.f32 %v731, %v973
        %v992 = vadd.f32 %v732, %v973
        %v993 = vadd.f32 %v733, %v973
        %v994 = vadd.f32 %v734, %v973
        %v995 = vadd.f32 %v735, %v973
        %v996 = vadd.f32 %v736, %v973
        %v997 = vadd.f32 %v737, %v973
        %v998 = vadd.f32 %v738, %v973
        %v999 = vadd.f32 %v739, %v973
        %v1000 = vadd.f32 %v740, %v973
        %v1001 = vadd.f32 %v741, %v973
        %v1002 = vadd.f32 %v742, %v973
        %v1003 = vadd.f32 %v743, %v973
        %v1004 = vadd.f32 %v744, %v973
        %v1005 = vadd.f32 %v745, %v973
        %v1006 = vadd.f32 %v746, %v973
        %v1007 = vadd.f32 %v747, %v973
        %v1008 = vadd.f32 %v748, %v973
        %v1009 = vadd.f32 %v749, %v973
        %v1010 = vadd.f32 %v750, %v973
        %v1011 = vadd.f32 %v751, %v973
        %v1012 = vadd.f32 %v752, %v973
        %v1013 = vadd.f32 %v753, %v973
        %v1014 = vadd.f32 %v754, %v973
        %v1015 = vadd.f32 %v755, %v973
        %v1016 = vadd.f32 %v756, %v973
        %v1017 = vadd.f32 %v757, %v973
        %v1018 = vadd.f32 %v758, %v973
        %v1019 = vadd.f32 %v759, %v973
        %v1020 = vadd.f32 %v760, %v973
        %v1021 = vadd.f32 %v761, %v973
        %v1022 = vadd.f32 %v762, %v973
        %v1023 = vadd.f32 %v763, %v973
        %v1024 = vadd.f32 %v764, %v973
        %v1025 = vadd.f32 %v765, %v973
        %v1026 = vadd.f32 %v766, %v973
        %v1027 = vadd.f32 %v767, %v973
        %v1028 = vadd.f32 %v768, %v973
        %v1029 = vadd.f32 %v769, %v973
        %v1030 = vadd.f32 %v770, %v973
        %v1031 = vadd.f32 %v771, %v973
        %v1032 = vadd.f32 %v772, %v973
        %v1033 = vadd.f32 %v773, %v973
        %v1034 = vadd.f32 %v774, %v973
        %v1035 = vadd.f32 %v775, %v973
        %v1036 = vadd.f32 %v776, %v973
        %v1037 = vadd.f32 %v777, %v973
        %v1038 = vadd.f32 %v778, %v973
        %v1039 = vadd.f32 %v779, %v973
        %v1040 = vadd.f32 %v780, %v973
        %v1041 = vadd.f32 %v781, %v973
        %v1042 = vadd.f32 %v782, %v973
        %v1043 = vadd.f32 %v783, %v973
        %v1044 = vadd.f32 %v784, %v973
        %v1045 = vadd.f32 %v785, %v973
        %v1046 = vadd.f32 %v786, %v973
        %v1047 = vadd.f32 %v787, %v973
        %v1048 = vadd.f32 %v788, %v973
        %v1049 = vadd.f32 %v789, %v973
        %v1050 = vadd.f32 %v790, %v973
        %v1051 = vadd.f32 %v791, %v973
        %v1052 = vadd.f32 %v792, %v973
        %v1053 = vadd.f32 %v793, %v973
        %v1054 = vadd.f32 %v794, %v973
        %v1055 = vadd.f32 %v795, %v973
        %v1056 = vadd.f32 %v796, %v973
        %v1057 = vadd.f32 %v797, %v973
        %v1058 = vadd.f32 %v798, %v973
        %v1059 = vadd.f32 %v799, %v973
        %v1060 = vadd.f32 %v800, %v973
        %v1061 = vadd.f32 %v801, %v973
        %v1062 = vadd.f32 %v802, %v973
        %v1063 = vadd.f32 %v803, %v973
        %v1064 = vadd.f32 %v804, %v973
        %v1065 = vadd.f32 %v805, %v973
        %v1066 = vadd.f32 %v806, %v973
        %v1067 = vadd.f32 %v807, %v973
        %v1068 = vadd.f32 %v808, %v973
        %v1069 = vadd.f32 %v809, %v973
        %v1070 = vadd.f32 %v810, %v973
        %v1071 = vadd.f32 %v811, %v973
        %v1072 = vadd.f32 %v812, %v973
        %v1073 = vadd.f32 %v813, %v973
        %v1074 = vadd.f32 %v814, %v973
        %v1075 = vadd.f32 %v815, %v973
        %v1076 = vadd.f32 %v816, %v973
        %v1077 = vadd.f32 %v817, %v973
        %v1078 = vadd.f32 %v818, %v973
        %v1079 = vadd.f32 %v819, %v973
        %v1080 = vadd.f32 %v820, %v973
        %v1081 = vadd.f32 %v821, %v973
        %v1082 = vadd.f32 %v822, %v973
        %v1083 = vadd.f32 %v823, %v973
        %v1084 = vadd.f32 %v824, %v973
        %v1085 = vadd.f32 %v825, %v973
        %v1086 = vadd.f32 %v826, %v973
        %v1087 = vadd.f32 %v827, %v973
        %v1088 = vadd.f32 %v828, %v973
        %v1089 = vadd.f32 %v829, %v973
        %v1090 = vadd.f32 %v830, %v973
        %v1091 = vadd.f32 %v831, %v973
        %v1092 = vadd.f32 %v832, %v973
        %v1093 = vadd.f32 %v833, %v973
        %v1094 = vadd.f32 %v834, %v973
        %v1095 = vadd.f32 %v835, %v973
        %v1096 = vadd.f32 %v836, %v973
        %v1097 = vadd.f32 %v837, %v973
        %v1098 = vadd.f32 %v838, %v973
        %v1099 = vadd.f32 %v839, %v973
        %v1100 = vadd.f32 %v840, %v973
        %v1101 = vadd.f32 %v841, %v973
        %v1102 = vadd.f32 %v842, %v973
        %v1103 = vadd.f32 %v843, %v973
        %v1104 = vadd.f32 %v844, %v973
        %v1105 = vadd.f32 %v845, %v973
        %v1106 = vadd.f32 %v846, %v973
        %v1107 = vadd.f32 %v847, %v973
        %v1108 = vadd.f32 %v848, %v973
        %v1109 = vadd.f32 %v849, %v973
        %v1110 = vadd.f32 %v850, %v973
        %v1111 = vadd.f32 %v851, %v973
        %v1112 = vadd.f32 %v852, %v973
        %v1113 = vadd.f32 %v853, %v973
        %v1114 = vadd.f32 %v854, %v973
        %v1115 = vadd.f32 %v855, %v973
        %v1116 = vadd.f32 %v856, %v973
        %v1117 = vadd.f32 %v857, %v973
        %v1118 = vadd.f32 %v858, %v973
        %v1119 = vadd.f32 %v859, %v973
        %v1120 = vadd.f32 %v860, %v973
        %v1121 = vadd.f32 %v861, %v973
        %v1122 = vadd.f32 %v862, %v973
        %v1123 = vadd.f32 %v863, %v973
        %v1124 = vadd.f32 %v864, %v973
        %v1125 = vadd.f32 %v865, %v973
        %v1126 = vadd.f32 %v866, %v973
        %v1127 = vadd.f32 %v867, %v973
        %v1128 = vadd.f32 %v868, %v973
        %v1129 = vadd.f32 %v869, %v973
        %v1130 = vadd.f32 %v870, %v973
        %v1131 = vadd.f32 %v871, %v973
        %v1132 = vadd.f32 %v872, %v973
        %v1133 = vadd.f32 %v873, %v973
        %v1134 = vadd.f32 %v874, %v973
        %v1135 = vadd.f32 %v875, %v973
        %v1136 = vadd.f32 %v876, %v973
        %v1137 = vadd.f32 %v877, %v973
        %v1138 = vadd.f32 %v878, %v973
        %v1139 = vadd.f32 %v879, %v973
        %v1140 = vadd.f32 %v880, %v973
        %v1141 = vadd.f32 %v881, %v973
        %v1142 = vadd.f32 %v882, %v973
        %v1143 = vadd.f32 %v883, %v973
        %v1144 = vadd.f32 %v884, %v973
        %v1145 = vadd.f32 %v885, %v973
        %v1146 = vadd.f32 %v886, %v973
        %v1147 = vadd.f32 %v887, %v973
        %v1148 = vadd.f32 %v888, %v973
        %v1149 = vadd.f32 %v889, %v973
        %v1150 = vadd.f32 %v890, %v973
        %v1151 = vadd.f32 %v891, %v973
        %v1152 = vadd.f32 %v892, %v973
        %v1153 = vadd.f32 %v893, %v973
        %v1154 = vadd.f32 %v894, %v973
        %v1155 = vadd.f32 %v895, %v973
        %v1156 = vadd.f32 %v896, %v973
        %v1157 = vadd.f32 %v897, %v973
        %v1158 = vadd.f32 %v898, %v973
        %v1159 = vadd.f32 %v899, %v973
        %v1160 = vadd.f32 %v900, %v973
        %v1161 = vadd.f32 %v901, %v973
        %v1162 = vadd.f32 %v902, %v973
        %v1163 = vadd.f32 %v903, %v973
        %v1164 = vadd.f32 %v904, %v973
        %v1165 = vadd.f32 %v905, %v973
        %v1166 = vadd.f32 %v906, %v973
        %v1167 = vadd.f32 %v907, %v973
        %v1168 = vadd.f32 %v908, %v973
        %v1169 = vadd.f32 %v909, %v973
        %v1170 = vadd.f32 %v910, %v973
        %v1171 = vadd.f32 %v911, %v973
        %v1172 = vadd.f32 %v912, %v973
        %v1173 = vadd.f32 %v913, %v973
        %v1174 = vadd.f32 %v914, %v973
        %v1175 = vadd.f32 %v915, %v973
        %v1176 = vadd.f32 %v916, %v973
        %v1177 = vadd.f32 %v917, %v973
        %v1178 = vadd.f32 %v918, %v973
        %v1179 = vadd.f32 %v919, %v973
        %v1180 = vadd.f32 %v920, %v973
        %v1181 = vadd.f32 %v921, %v973
        %v1182 = vadd.f32 %v922, %v973
        %v1183 = vadd.f32 %v923, %v973
        %v1184 = vadd.f32 %v924, %v973
        %v1185 = vadd.f32 %v925, %v973
        %v1186 = vadd.f32 %v926, %v973
        %v1187 = vadd.f32 %v927, %v973
        %v1188 = vadd.f32 %v928, %v973
        %v1189 = vadd.f32 %v929, %v973
        %v1190 = vadd.f32 %v930, %v973
        %v1191 = vadd.f32 %v931, %v973
        %v1192 = vadd.f32 %v932, %v973
        %v1193 = vadd.f32 %v933, %v973
        %v1194 = vadd.f32 %v934, %v973
        %v1195 = vadd.f32 %v935, %v973
        %v1196 = vadd.f32 %v936, %v973
        %v1197 = vadd.f32 %v937, %v973
        %v1198 = vadd.f32 %v938, %v973
        %v1199 = vadd.f32 %v939, %v973
        %v1200 = vadd.f32 %v940, %v973
        %v1201 = vadd.f32 %v941, %v973
        %v1202 = vadd.f32 %v942, %v973
        %v1203 = vadd.f32 %v943, %v973
        %v1204 = vadd.f32 %v944, %v973
        %v1205 = vadd.f32 %v945, %v973
        %v1206 = vadd.f32 %v946, %v973
        %v1207 = vadd.f32 %v947, %v973
        %v1208 = vadd.f32 %v948, %v973
        %v1209 = vadd.f32 %v949, %v973
        %v1210 = vadd.f32 %v950, %v973
        %v1211 = vadd.f32 %v951, %v973
        %v1212 = vadd.f32 %v952, %v973
        %v1213 = vadd.f32 %v953, %v973
        %v1214 = vadd.f32 %v954, %v973
        %v1215 = vadd.f32 %v955, %v973
        %v1216 = vadd.f32 %v956, %v973
        %v1217 = vadd.f32 %v957, %v973
        %v1218 = vadd.f32 %v958, %v973
        %v1219 = vadd.f32 %v959, %v973
        %v1220 = vadd.f32 %v960, %v973
        %v1221 = vadd.f32 %v961, %v973
        %v1222 = vadd.f32 %v962, %v973
        %v1223 = vadd.f32 %v963, %v973
        %v1224 = vadd.f32 %v964, %v973
        %v1225 = vadd.f32 %v965, %v973
        %v1226 = vadd.f32 %v966, %v973
        %v1227 = vadd.f32 %v967, %v973
        %v1228 = vadd.f32 %v968, %v973
        %v1229 = vadd.f32 %v969, %v973
        %v1230 = vadd.f32 %v970, %v973
        %v1231 = vmax.f32 %v975, 0.0
        %v1232 = vmax.f32 %v976, 0.0
        %v1233 = vmax.f32 %v977, 0.0
        %v1234 = vmax.f32 %v978, 0.0
        %v1235 = vmax.f32 %v979, 0.0
        %v1236 = vmax.f32 %v980, 0.0
        %v1237 = vmax.f32 %v981, 0.0
        %v1238 = vmax.f32 %v982, 0.0
        %v1239 = vmax.f32 %v983, 0.0
        %v1240 = vmax.f32 %v984, 0.0
        %v1241 = vmax.f32 %v985, 0.0
        %v1242 = vmax.f32 %v986, 0.0
        %v1243 = vmax.f32 %v987, 0.0
        %v1244 = vmax.f32 %v988, 0.0
        %v1245 = vmax.f32 %v989, 0.0
        %v1246 = vmax.f32 %v990, 0.0
        %v1247 = vmax.f32 %v991, 0.0
        %v1248 = vmax.f32 %v992, 0.0
        %v1249 = vmax.f32 %v993, 0.0
        %v1250 = vmax.f32 %v994, 0.0
        %v1251 = vmax.f32 %v995, 0.0
        %v1252 = vmax.f32 %v996, 0.0
        %v1253 = vmax.f32 %v997, 0.0
        %v1254 = vmax.f32 %v998, 0.0
        %v1255 = vmax.f32 %v999, 0.0
        %v1256 = vmax.f32 %v1000, 0.0
        %v1257 = vmax.f32 %v1001, 0.0
        %v1258 = vmax.f32 %v1002, 0.0
        %v1259 = vmax.f32 %v1003, 0.0
        %v1260 = vmax.f32 %v1004, 0.0
        %v1261 = vmax.f32 %v1005, 0.0
        %v1262 = vmax.f32 %v1006, 0.0
        %v1263 = vmax.f32 %v1007, 0.0
        %v1264 = vmax.f32 %v1008, 0.0
        %v1265 = vmax.f32 %v1009, 0.0
        %v1266 = vmax.f32 %v1010, 0.0
        %v1267 = vmax.f32 %v1011, 0.0
        %v1268 = vmax.f32 %v1012, 0.0
        %v1269 = vmax.f32 %v1013, 0.0
        %v1270 = vmax.f32 %v1014, 0.0
        %v1271 = vmax.f32 %v1015, 0.0
        %v1272 = vmax.f32 %v1016, 0.0
        %v1273 = vmax.f32 %v1017, 0.0
        %v1274 = vmax.f32 %v1018, 0.0
        %v1275 = vmax.f32 %v1019, 0.0
        %v1276 = vmax.f32 %v1020, 0.0
        %v1277 = vmax.f32 %v1021, 0.0
        %v1278 = vmax.f32 %v1022, 0.0
        %v1279 = vmax.f32 %v1023, 0.0
        %v1280 = vmax.f32 %v1024, 0.0
        %v1281 = vmax.f32 %v1025, 0.0
        %v1282 = vmax.f32 %v1026, 0.0
        %v1283 = vmax.f32 %v1027, 0.0
        %v1284 = vmax.f32 %v1028, 0.0
        %v1285 = vmax.f32 %v1029, 0.0
        %v1286 = vmax.f32 %v1030, 0.0
        %v1287 = vmax.f32 %v1031, 0.0
        %v1288 = vmax.f32 %v1032, 0.0
        %v1289 = vmax.f32 %v1033, 0.0
        %v1290 = vmax.f32 %v1034, 0.0
        %v1291 = vmax.f32 %v1035, 0.0
        %v1292 = vmax.f32 %v1036, 0.0
        %v1293 = vmax.f32 %v1037, 0.0
        %v1294 = vmax.f32 %v1038, 0.0
        %v1295 = vmax.f32 %v1039, 0.0
        %v1296 = vmax.f32 %v1040, 0.0
        %v1297 = vmax.f32 %v1041, 0.0
        %v1298 = vmax.f32 %v1042, 0.0
        %v1299 = vmax.f32 %v1043, 0.0
        %v1300 = vmax.f32 %v1044, 0.0
        %v1301 = vmax.f32 %v1045, 0.0
        %v1302 = vmax.f32 %v1046, 0.0
        %v1303 = vmax.f32 %v1047, 0.0
        %v1304 = vmax.f32 %v1048, 0.0
        %v1305 = vmax.f32 %v1049, 0.0
        %v1306 = vmax.f32 %v1050, 0.0
        %v1307 = vmax.f32 %v1051, 0.0
        %v1308 = vmax.f32 %v1052, 0.0
        %v1309 = vmax.f32 %v1053, 0.0
        %v1310 = vmax.f32 %v1054, 0.0
        %v1311 = vmax.f32 %v1055, 0.0
        %v1312 = vmax.f32 %v1056, 0.0
        %v1313 = vmax.f32 %v1057, 0.0
        %v1314 = vmax.f32 %v1058, 0.0
        %v1315 = vmax.f32 %v1059, 0.0
        %v1316 = vmax.f32 %v1060, 0.0
        %v1317 = vmax.f32 %v1061, 0.0
        %v1318 = vmax.f32 %v1062, 0.0
        %v1319 = vmax.f32 %v1063, 0.0
        %v1320 = vmax.f32 %v1064, 0.0
        %v1321 = vmax.f32 %v1065, 0.0
        %v1322 = vmax.f32 %v1066, 0.0
        %v1323 = vmax.f32 %v1067, 0.0
        %v1324 = vmax.f32 %v1068, 0.0
        %v1325 = vmax.f32 %v1069, 0.0
        %v1326 = vmax.f32 %v1070, 0.0
        %v1327 = vmax.f32 %v1071, 0.0
        %v1328 = vmax.f32 %v1072, 0.0
        %v1329 = vmax.f32 %v1073, 0.0
        %v1330 = vmax.f32 %v1074, 0.0
        %v1331 = vmax.f32 %v1075, 0.0
        %v1332 = vmax.f32 %v1076, 0.0
        %v1333 = vmax.f32 %v1077, 0.0
        %v1334 = vmax.f32 %v1078, 0.0
        %v1335 = vmax.f32 %v1079, 0.0
        %v1336 = vmax.f32 %v1080, 0.0
        %v1337 = vmax.f32 %v1081, 0.0
        %v1338 = vmax.f32 %v1082, 0.0
        %v1339 = vmax.f32 %v1083, 0.0
        %v1340 = vmax.f32 %v1084, 0.0
        %v1341 = vmax.f32 %v1085, 0.0
        %v1342 = vmax.f32 %v1086, 0.0
        %v1343 = vmax.f32 %v1087, 0.0
        %v1344 = vmax.f32 %v1088, 0.0
        %v1345 = vmax.f32 %v1089, 0.0
        %v1346 = vmax.f32 %v1090, 0.0
        %v1347 = vmax.f32 %v1091, 0.0
        %v1348 = vmax.f32 %v1092, 0.0
        %v1349 = vmax.f32 %v1093, 0.0
        %v1350 = vmax.f32 %v1094, 0.0
        %v1351 = vmax.f32 %v1095, 0.0
        %v1352 = vmax.f32 %v1096, 0.0
        %v1353 = vmax.f32 %v1097, 0.0
        %v1354 = vmax.f32 %v1098, 0.0
        %v1355 = vmax.f32 %v1099, 0.0
        %v1356 = vmax.f32 %v1100, 0.0
        %v1357 = vmax.f32 %v1101, 0.0
        %v1358 = vmax.f32 %v1102, 0.0
        %v1359 = vmax.f32 %v1103, 0.0
        %v1360 = vmax.f32 %v1104, 0.0
        %v1361 = vmax.f32 %v1105, 0.0
        %v1362 = vmax.f32 %v1106, 0.0
        %v1363 = vmax.f32 %v1107, 0.0
        %v1364 = vmax.f32 %v1108, 0.0
        %v1365 = vmax.f32 %v1109, 0.0
        %v1366 = vmax.f32 %v1110, 0.0
        %v1367 = vmax.f32 %v1111, 0.0
        %v1368 = vmax.f32 %v1112, 0.0
        %v1369 = vmax.f32 %v1113, 0.0
        %v1370 = vmax.f32 %v1114, 0.0
        %v1371 = vmax.f32 %v1115, 0.0
        %v1372 = vmax.f32 %v1116, 0.0
        %v1373 = vmax.f32 %v1117, 0.0
        %v1374 = vmax.f32 %v1118, 0.0
        %v1375 = vmax.f32 %v1119, 0.0
        %v1376 = vmax.f32 %v1120, 0.0
        %v1377 = vmax.f32 %v1121, 0.0
        %v1378 = vmax.f32 %v1122, 0.0
        %v1379 = vmax.f32 %v1123, 0.0
        %v1380 = vmax.f32 %v1124, 0.0
        %v1381 = vmax.f32 %v1125, 0.0
        %v1382 = vmax.f32 %v1126, 0.0
        %v1383 = vmax.f32 %v1127, 0.0
        %v1384 = vmax.f32 %v1128, 0.0
        %v1385 = vmax.f32 %v1129, 0.0
        %v1386 = vmax.f32 %v1130, 0.0
        %v1387 = vmax.f32 %v1131, 0.0
        %v1388 = vmax.f32 %v1132, 0.0
        %v1389 = vmax.f32 %v1133, 0.0
        %v1390 = vmax.f32 %v1134, 0.0
        %v1391 = vmax.f32 %v1135, 0.0
        %v1392 = vmax.f32 %v1136, 0.0
        %v1393 = vmax.f32 %v1137, 0.0
        %v1394 = vmax.f32 %v1138, 0.0
        %v1395 = vmax.f32 %v1139, 0.0
        %v1396 = vmax.f32 %v1140, 0.0
        %v1397 = vmax.f32 %v1141, 0.0
        %v1398 = vmax.f32 %v1142, 0.0
        %v1399 = vmax.f32 %v1143, 0.0
        %v1400 = vmax.f32 %v1144, 0.0
        %v1401 = vmax.f32 %v1145, 0.0
        %v1402 = vmax.f32 %v1146, 0.0
        %v1403 = vmax.f32 %v1147, 0.0
        %v1404 = vmax.f32 %v1148, 0.0
        %v1405 = vmax.f32 %v1149, 0.0
        %v1406 = vmax.f32 %v1150, 0.0
        %v1407 = vmax.f32 %v1151, 0.0
        %v1408 = vmax.f32 %v1152, 0.0
        %v1409 = vmax.f32 %v1153, 0.0
        %v1410 = vmax.f32 %v1154, 0.0
        %v1411 = vmax.f32 %v1155, 0.0
        %v1412 = vmax.f32 %v1156, 0.0
        %v1413 = vmax.f32 %v1157, 0.0
        %v1414 = vmax.f32 %v1158, 0.0
        %v1415 = vmax.f32 %v1159, 0.0
        %v1416 = vmax.f32 %v1160, 0.0
        %v1417 = vmax.f32 %v1161, 0.0
        %v1418 = vmax.f32 %v1162, 0.0
        %v1419 = vmax.f32 %v1163, 0.0
        %v1420 = vmax.f32 %v1164, 0.0
        %v1421 = vmax.f32 %v1165, 0.0
        %v1422 = vmax.f32 %v1166, 0.0
        %v1423 = vmax.f32 %v1167, 0.0
        %v1424 = vmax.f32 %v1168, 0.0
        %v1425 = vmax.f32 %v1169, 0.0
        %v1426 = vmax.f32 %v1170, 0.0
        %v1427 = vmax.f32 %v1171, 0.0
        %v1428 = vmax.f32 %v1172, 0.0
        %v1429 = vmax.f32 %v1173, 0.0
        %v1430 = vmax.f32 %v1174, 0.0
        %v1431 = vmax.f32 %v1175, 0.0
        %v1432 = vmax.f32 %v1176, 0.0
        %v1433 = vmax.f32 %v1177, 0.0
        %v1434 = vmax.f32 %v1178, 0.0
        %v1435 = vmax.f32 %v1179, 0.0
        %v1436 = vmax.f32 %v1180, 0.0
        %v1437 = vmax.f32 %v1181, 0.0
        %v1438 = vmax.f32 %v1182, 0.0
        %v1439 = vmax.f32 %v1183, 0.0
        %v1440 = vmax.f32 %v1184, 0.0
        %v1441 = vmax.f32 %v1185, 0.0
        %v1442 = vmax.f32 %v1186, 0.0
        %v1443 = vmax.f32 %v1187, 0.0
        %v1444 = vmax.f32 %v1188, 0.0
        %v1445 = vmax.f32 %v1189, 0.0
        %v1446 = vmax.f32 %v1190, 0.0
        %v1447 = vmax.f32 %v1191, 0.0
        %v1448 = vmax.f32 %v1192, 0.0
        %v1449 = vmax.f32 %v1193, 0.0
        %v1450 = vmax.f32 %v1194, 0.0
        %v1451 = vmax.f32 %v1195, 0.0
        %v1452 = vmax.f32 %v1196, 0.0
        %v1453 = vmax.f32 %v1197, 0.0
        %v1454 = vmax.f32 %v1198, 0.0
        %v1455 = vmax.f32 %v1199, 0.0
        %v1456 = vmax.f32 %v1200, 0.0
        %v1457 = vmax.f32 %v1201, 0.0
        %v1458 = vmax.f32 %v1202, 0.0
        %v1459 = vmax.f32 %v1203, 0.0
        %v1460 = vmax.f32 %v1204, 0.0
        %v1461 = vmax.f32 %v1205, 0.0
        %v1462 = vmax.f32 %v1206, 0.0
        %v1463 = vmax.f32 %v1207, 0.0
        %v1464 = vmax.f32 %v1208, 0.0
        %v1465 = vmax.f32 %v1209, 0.0
        %v1466 = vmax.f32 %v1210, 0.0
        %v1467 = vmax.f32 %v1211, 0.0
        %v1468 = vmax.f32 %v1212, 0.0
        %v1469 = vmax.f32 %v1213, 0.0
        %v1470 = vmax.f32 %v1214, 0.0
        %v1471 = vmax.f32 %v1215, 0.0
        %v1472 = vmax.f32 %v1216, 0.0
        %v1473 = vmax.f32 %v1217, 0.0
        %v1474 = vmax.f32 %v1218, 0.0
        %v1475 = vmax.f32 %v1219, 0.0
        %v1476 = vmax.f32 %v1220, 0.0
        %v1477 = vmax.f32 %v1221, 0.0
        %v1478 = vmax.f32 %v1222, 0.0
        %v1479 = vmax.f32 %v1223, 0.0
        %v1480 = vmax.f32 %v1224, 0.0
        %v1481 = vmax.f32 %v1225, 0.0
        %v1482 = vmax.f32 %v1226, 0.0
        %v1483 = vmax.f32 %v1227, 0.0
        %v1484 = vmax.f32 %v1228, 0.0
        %v1485 = vmax.f32 %v1229, 0.0
        %v1486 = vmax.f32 %v1230, 0.0
        %1487 = vst [vmem:[%s191] sm:$0xff] %v1231
        %1488 = vst [vmem:[%s191 + $0x8] sm:$0xff] %v1232
        %1489 = vst [vmem:[%s191 + $0x10] sm:$0xff] %v1233
        %1490 = vst [vmem:[%s191 + $0x18] sm:$0xff] %v1234
        %1491 = vst [vmem:[%s191 + $0x20] sm:$0xff] %v1235
        %1492 = vst [vmem:[%s191 + $0x28] sm:$0xff] %v1236
        %1493 = vst [vmem:[%s191 + $0x30] sm:$0xff] %v1237
        %1494 = vst [vmem:[%s191 + $0x38] sm:$0xff] %v1238
        %1495 = vst [vmem:[%s191 + $0x40] sm:$0xff] %v1239
        %1496 = vst [vmem:[%s191 + $0x48] sm:$0xff] %v1240
        %1497 = vst [vmem:[%s191 + $0x50] sm:$0xff] %v1241
        %1498 = vst [vmem:[%s191 + $0x58] sm:$0xff] %v1242
        %1499 = vst [vmem:[%s191 + $0x60] sm:$0xff] %v1243
        %1500 = vst [vmem:[%s191 + $0x68] sm:$0xff] %v1244
        %1501 = vst [vmem:[%s191 + $0x70] sm:$0xff] %v1245
        %1502 = vst [vmem:[%s191 + $0x78] sm:$0xff] %v1246
        %1503 = vst [vmem:[%s191 + $0x80] sm:$0xff] %v1247
        %1504 = vst [vmem:[%s191 + $0x88] sm:$0xff] %v1248
        %1505 = vst [vmem:[%s191 + $0x90] sm:$0xff] %v1249
        %1506 = vst [vmem:[%s191 + $0x98] sm:$0xff] %v1250
        %1507 = vst [vmem:[%s191 + $0xa0] sm:$0xff] %v1251
        %1508 = vst [vmem:[%s191 + $0xa8] sm:$0xff] %v1252
        %1509 = vst [vmem:[%s191 + $0xb0] sm:$0xff] %v1253
        %1510 = vst [vmem:[%s191 + $0xb8] sm:$0xff] %v1254
        %1511 = vst [vmem:[%s191 + $0xc0] sm:$0xff] %v1255
        %1512 = vst [vmem:[%s191 + $0xc8] sm:$0xff] %v1256
        %1513 = vst [vmem:[%s191 + $0xd0] sm:$0xff] %v1257
        %1514 = vst [vmem:[%s191 + $0xd8] sm:$0xff] %v1258
        %1515 = vst [vmem:[%s191 + $0xe0] sm:$0xff] %v1259
        %1516 = vst [vmem:[%s191 + $0xe8] sm:$0xff] %v1260
        %1517 = vst [vmem:[%s191 + $0xf0] sm:$0xff] %v1261
        %1518 = vst [vmem:[%s191 + $0xf8] sm:$0xff] %v1262
        %1519 = vst [vmem:[%s191 + $0x100] sm:$0xff] %v1263
        %1520 = vst [vmem:[%s191 + $0x108] sm:$0xff] %v1264
        %1521 = vst [vmem:[%s191 + $0x110] sm:$0xff] %v1265
        %1522 = vst [vmem:[%s191 + $0x118] sm:$0xff] %v1266
        %1523 = vst [vmem:[%s191 + $0x120] sm:$0xff] %v1267
        %1524 = vst [vmem:[%s191 + $0x128] sm:$0xff] %v1268
        %1525 = vst [vmem:[%s191 + $0x130] sm:$0xff] %v1269
        %1526 = vst [vmem:[%s191 + $0x138] sm:$0xff] %v1270
        %1527 = vst [vmem:[%s191 + $0x140] sm:$0xff] %v1271
        %1528 = vst [vmem:[%s191 + $0x148] sm:$0xff] %v1272
        %1529 = vst [vmem:[%s191 + $0x150] sm:$0xff] %v1273
        %1530 = vst [vmem:[%s191 + $0x158] sm:$0xff] %v1274
        %1531 = vst [vmem:[%s191 + $0x160] sm:$0xff] %v1275
        %1532 = vst [vmem:[%s191 + $0x168] sm:$0xff] %v1276
        %1533 = vst [vmem:[%s191 + $0x170] sm:$0xff] %v1277
        %1534 = vst [vmem:[%s191 + $0x178] sm:$0xff] %v1278
        %1535 = vst [vmem:[%s191 + $0x180] sm:$0xff] %v1279
        %1536 = vst [vmem:[%s191 + $0x188] sm:$0xff] %v1280
        %1537 = vst [vmem:[%s191 + $0x190] sm:$0xff] %v1281
        %1538 = vst [vmem:[%s191 + $0x198] sm:$0xff] %v1282
        %1539 = vst [vmem:[%s191 + $0x1a0] sm:$0xff] %v1283
        %1540 = vst [vmem:[%s191 + $0x1a8] sm:$0xff] %v1284
        %1541 = vst [vmem:[%s191 + $0x1b0] sm:$0xff] %v1285
        %1542 = vst [vmem:[%s191 + $0x1b8] sm:$0xff] %v1286
        %1543 = vst [vmem:[%s191 + $0x1c0] sm:$0xff] %v1287
        %1544 = vst [vmem:[%s191 + $0x1c8] sm:$0xff] %v1288
        %1545 = vst [vmem:[%s191 + $0x1d0] sm:$0xff] %v1289
        %1546 = vst [vmem:[%s191 + $0x1d8] sm:$0xff] %v1290
        %1547 = vst [vmem:[%s191 + $0x1e0] sm:$0xff] %v1291
        %1548 = vst [vmem:[%s191 + $0x1e8] sm:$0xff] %v1292
        %1549 = vst [vmem:[%s191 + $0x1f0] sm:$0xff] %v1293
        %1550 = vst [vmem:[%s191 + $0x1f8] sm:$0xff] %v1294
        %1551 = vst [vmem:[%s191 + $0x200] sm:$0xff] %v1295
        %1552 = vst [vmem:[%s191 + $0x208] sm:$0xff] %v1296
        %1553 = vst [vmem:[%s191 + $0x210] sm:$0xff] %v1297
        %1554 = vst [vmem:[%s191 + $0x218] sm:$0xff] %v1298
        %1555 = vst [vmem:[%s191 + $0x220] sm:$0xff] %v1299
        %1556 = vst [vmem:[%s191 + $0x228] sm:$0xff] %v1300
        %1557 = vst [vmem:[%s191 + $0x230] sm:$0xff] %v1301
        %1558 = vst [vmem:[%s191 + $0x238] sm:$0xff] %v1302
        %1559 = vst [vmem:[%s191 + $0x240] sm:$0xff] %v1303
        %1560 = vst [vmem:[%s191 + $0x248] sm:$0xff] %v1304
        %1561 = vst [vmem:[%s191 + $0x250] sm:$0xff] %v1305
        %1562 = vst [vmem:[%s191 + $0x258] sm:$0xff] %v1306
        %1563 = vst [vmem:[%s191 + $0x260] sm:$0xff] %v1307
        %1564 = vst [vmem:[%s191 + $0x268] sm:$0xff] %v1308
        %1565 = vst [vmem:[%s191 + $0x270] sm:$0xff] %v1309
        %1566 = vst [vmem:[%s191 + $0x278] sm:$0xff] %v1310
        %1567 = vst [vmem:[%s191 + $0x280] sm:$0xff] %v1311
        %1568 = vst [vmem:[%s191 + $0x288] sm:$0xff] %v1312
        %1569 = vst [vmem:[%s191 + $0x290] sm:$0xff] %v1313
        %1570 = vst [vmem:[%s191 + $0x298] sm:$0xff] %v1314
        %1571 = vst [vmem:[%s191 + $0x2a0] sm:$0xff] %v1315
        %1572 = vst [vmem:[%s191 + $0x2a8] sm:$0xff] %v1316
        %1573 = vst [vmem:[%s191 + $0x2b0] sm:$0xff] %v1317
        %1574 = vst [vmem:[%s191 + $0x2b8] sm:$0xff] %v1318
        %1575 = vst [vmem:[%s191 + $0x2c0] sm:$0xff] %v1319
        %1576 = vst [vmem:[%s191 + $0x2c8] sm:$0xff] %v1320
        %1577 = vst [vmem:[%s191 + $0x2d0] sm:$0xff] %v1321
        %1578 = vst [vmem:[%s191 + $0x2d8] sm:$0xff] %v1322
        %1579 = vst [vmem:[%s191 + $0x2e0] sm:$0xff] %v1323
        %1580 = vst [vmem:[%s191 + $0x2e8] sm:$0xff] %v1324
        %1581 = vst [vmem:[%s191 + $0x2f0] sm:$0xff] %v1325
        %1582 = vst [vmem:[%s191 + $0x2f8] sm:$0xff] %v1326
        %1583 = vst [vmem:[%s191 + $0x300] sm:$0xff] %v1327
        %1584 = vst [vmem:[%s191 + $0x308] sm:$0xff] %v1328
        %1585 = vst [vmem:[%s191 + $0x310] sm:$0xff] %v1329
        %1586 = vst [vmem:[%s191 + $0x318] sm:$0xff] %v1330
        %1587 = vst [vmem:[%s191 + $0x320] sm:$0xff] %v1331
        %1588 = vst [vmem:[%s191 + $0x328] sm:$0xff] %v1332
        %1589 = vst [vmem:[%s191 + $0x330] sm:$0xff] %v1333
        %1590 = vst [vmem:[%s191 + $0x338] sm:$0xff] %v1334
        %1591 = vst [vmem:[%s191 + $0x340] sm:$0xff] %v1335
        %1592 = vst [vmem:[%s191 + $0x348] sm:$0xff] %v1336
        %1593 = vst [vmem:[%s191 + $0x350] sm:$0xff] %v1337
        %1594 = vst [vmem:[%s191 + $0x358] sm:$0xff] %v1338
        %1595 = vst [vmem:[%s191 + $0x360] sm:$0xff] %v1339
        %1596 = vst [vmem:[%s191 + $0x368] sm:$0xff] %v1340
        %1597 = vst [vmem:[%s191 + $0x370] sm:$0xff] %v1341
        %1598 = vst [vmem:[%s191 + $0x378] sm:$0xff] %v1342
        %1599 = vst [vmem:[%s191 + $0x380] sm:$0xff] %v1343
        %1600 = vst [vmem:[%s191 + $0x388] sm:$0xff] %v1344
        %1601 = vst [vmem:[%s191 + $0x390] sm:$0xff] %v1345
        %1602 = vst [vmem:[%s191 + $0x398] sm:$0xff] %v1346
        %1603 = vst [vmem:[%s191 + $0x3a0] sm:$0xff] %v1347
        %1604 = vst [vmem:[%s191 + $0x3a8] sm:$0xff] %v1348
        %1605 = vst [vmem:[%s191 + $0x3b0] sm:$0xff] %v1349
        %1606 = vst [vmem:[%s191 + $0x3b8] sm:$0xff] %v1350
        %1607 = vst [vmem:[%s191 + $0x3c0] sm:$0xff] %v1351
        %1608 = vst [vmem:[%s191 + $0x3c8] sm:$0xff] %v1352
        %1609 = vst [vmem:[%s191 + $0x3d0] sm:$0xff] %v1353
        %1610 = vst [vmem:[%s191 + $0x3d8] sm:$0xff] %v1354
        %1611 = vst [vmem:[%s191 + $0x3e0] sm:$0xff] %v1355
        %1612 = vst [vmem:[%s191 + $0x3e8] sm:$0xff] %v1356
        %1613 = vst [vmem:[%s191 + $0x3f0] sm:$0xff] %v1357
        %1614 = vst [vmem:[%s191 + $0x3f8] sm:$0xff] %v1358
        %1615 = vst [vmem:[%s191 + $0x400] sm:$0xff] %v1359
        %1616 = vst [vmem:[%s191 + $0x408] sm:$0xff] %v1360
        %1617 = vst [vmem:[%s191 + $0x410] sm:$0xff] %v1361
        %1618 = vst [vmem:[%s191 + $0x418] sm:$0xff] %v1362
        %1619 = vst [vmem:[%s191 + $0x420] sm:$0xff] %v1363
        %1620 = vst [vmem:[%s191 + $0x428] sm:$0xff] %v1364
        %1621 = vst [vmem:[%s191 + $0x430] sm:$0xff] %v1365
        %1622 = vst [vmem:[%s191 + $0x438] sm:$0xff] %v1366
        %1623 = vst [vmem:[%s191 + $0x440] sm:$0xff] %v1367
        %1624 = vst [vmem:[%s191 + $0x448] sm:$0xff] %v1368
        %1625 = vst [vmem:[%s191 + $0x450] sm:$0xff] %v1369
        %1626 = vst [vmem:[%s191 + $0x458] sm:$0xff] %v1370
        %1627 = vst [vmem:[%s191 + $0x460] sm:$0xff] %v1371
        %1628 = vst [vmem:[%s191 + $0x468] sm:$0xff] %v1372
        %1629 = vst [vmem:[%s191 + $0x470] sm:$0xff] %v1373
        %1630 = vst [vmem:[%s191 + $0x478] sm:$0xff] %v1374
        %1631 = vst [vmem:[%s191 + $0x480] sm:$0xff] %v1375
        %1632 = vst [vmem:[%s191 + $0x488] sm:$0xff] %v1376
        %1633 = vst [vmem:[%s191 + $0x490] sm:$0xff] %v1377
        %1634 = vst [vmem:[%s191 + $0x498] sm:$0xff] %v1378
        %1635 = vst [vmem:[%s191 + $0x4a0] sm:$0xff] %v1379
        %1636 = vst [vmem:[%s191 + $0x4a8] sm:$0xff] %v1380
        %1637 = vst [vmem:[%s191 + $0x4b0] sm:$0xff] %v1381
        %1638 = vst [vmem:[%s191 + $0x4b8] sm:$0xff] %v1382
        %1639 = vst [vmem:[%s191 + $0x4c0] sm:$0xff] %v1383
        %1640 = vst [vmem:[%s191 + $0x4c8] sm:$0xff] %v1384
        %1641 = vst [vmem:[%s191 + $0x4d0] sm:$0xff] %v1385
        %1642 = vst [vmem:[%s191 + $0x4d8] sm:$0xff] %v1386
        %1643 = vst [vmem:[%s191 + $0x4e0] sm:$0xff] %v1387
        %1644 = vst [vmem:[%s191 + $0x4e8] sm:$0xff] %v1388
        %1645 = vst [vmem:[%s191 + $0x4f0] sm:$0xff] %v1389
        %1646 = vst [vmem:[%s191 + $0x4f8] sm:$0xff] %v1390
        %1647 = vst [vmem:[%s191 + $0x500] sm:$0xff] %v1391
        %1648 = vst [vmem:[%s191 + $0x508] sm:$0xff] %v1392
        %1649 = vst [vmem:[%s191 + $0x510] sm:$0xff] %v1393
        %1650 = vst [vmem:[%s191 + $0x518] sm:$0xff] %v1394
        %1651 = vst [vmem:[%s191 + $0x520] sm:$0xff] %v1395
        %1652 = vst [vmem:[%s191 + $0x528] sm:$0xff] %v1396
        %1653 = vst [vmem:[%s191 + $0x530] sm:$0xff] %v1397
        %1654 = vst [vmem:[%s191 + $0x538] sm:$0xff] %v1398
        %1655 = vst [vmem:[%s191 + $0x540] sm:$0xff] %v1399
        %1656 = vst [vmem:[%s191 + $0x548] sm:$0xff] %v1400
        %1657 = vst [vmem:[%s191 + $0x550] sm:$0xff] %v1401
        %1658 = vst [vmem:[%s191 + $0x558] sm:$0xff] %v1402
        %1659 = vst [vmem:[%s191 + $0x560] sm:$0xff] %v1403
        %1660 = vst [vmem:[%s191 + $0x568] sm:$0xff] %v1404
        %1661 = vst [vmem:[%s191 + $0x570] sm:$0xff] %v1405
        %1662 = vst [vmem:[%s191 + $0x578] sm:$0xff] %v1406
        %1663 = vst [vmem:[%s191 + $0x580] sm:$0xff] %v1407
        %1664 = vst [vmem:[%s191 + $0x588] sm:$0xff] %v1408
        %1665 = vst [vmem:[%s191 + $0x590] sm:$0xff] %v1409
        %1666 = vst [vmem:[%s191 + $0x598] sm:$0xff] %v1410
        %1667 = vst [vmem:[%s191 + $0x5a0] sm:$0xff] %v1411
        %1668 = vst [vmem:[%s191 + $0x5a8] sm:$0xff] %v1412
        %1669 = vst [vmem:[%s191 + $0x5b0] sm:$0xff] %v1413
        %1670 = vst [vmem:[%s191 + $0x5b8] sm:$0xff] %v1414
        %1671 = vst [vmem:[%s191 + $0x5c0] sm:$0xff] %v1415
        %1672 = vst [vmem:[%s191 + $0x5c8] sm:$0xff] %v1416
        %1673 = vst [vmem:[%s191 + $0x5d0] sm:$0xff] %v1417
        %1674 = vst [vmem:[%s191 + $0x5d8] sm:$0xff] %v1418
        %1675 = vst [vmem:[%s191 + $0x5e0] sm:$0xff] %v1419
        %1676 = vst [vmem:[%s191 + $0x5e8] sm:$0xff] %v1420
        %1677 = vst [vmem:[%s191 + $0x5f0] sm:$0xff] %v1421
        %1678 = vst [vmem:[%s191 + $0x5f8] sm:$0xff] %v1422
        %1679 = vst [vmem:[%s191 + $0x600] sm:$0xff] %v1423
        %1680 = vst [vmem:[%s191 + $0x608] sm:$0xff] %v1424
        %1681 = vst [vmem:[%s191 + $0x610] sm:$0xff] %v1425
        %1682 = vst [vmem:[%s191 + $0x618] sm:$0xff] %v1426
        %1683 = vst [vmem:[%s191 + $0x620] sm:$0xff] %v1427
        %1684 = vst [vmem:[%s191 + $0x628] sm:$0xff] %v1428
        %1685 = vst [vmem:[%s191 + $0x630] sm:$0xff] %v1429
        %1686 = vst [vmem:[%s191 + $0x638] sm:$0xff] %v1430
        %1687 = vst [vmem:[%s191 + $0x640] sm:$0xff] %v1431
        %1688 = vst [vmem:[%s191 + $0x648] sm:$0xff] %v1432
        %1689 = vst [vmem:[%s191 + $0x650] sm:$0xff] %v1433
        %1690 = vst [vmem:[%s191 + $0x658] sm:$0xff] %v1434
        %1691 = vst [vmem:[%s191 + $0x660] sm:$0xff] %v1435
        %1692 = vst [vmem:[%s191 + $0x668] sm:$0xff] %v1436
        %1693 = vst [vmem:[%s191 + $0x670] sm:$0xff] %v1437
        %1694 = vst [vmem:[%s191 + $0x678] sm:$0xff] %v1438
        %1695 = vst [vmem:[%s191 + $0x680] sm:$0xff] %v1439
        %1696 = vst [vmem:[%s191 + $0x688] sm:$0xff] %v1440
        %1697 = vst [vmem:[%s191 + $0x690] sm:$0xff] %v1441
        %1698 = vst [vmem:[%s191 + $0x698] sm:$0xff] %v1442
        %1699 = vst [vmem:[%s191 + $0x6a0] sm:$0xff] %v1443
        %1700 = vst [vmem:[%s191 + $0x6a8] sm:$0xff] %v1444
        %1701 = vst [vmem:[%s191 + $0x6b0] sm:$0xff] %v1445
        %1702 = vst [vmem:[%s191 + $0x6b8] sm:$0xff] %v1446
        %1703 = vst [vmem:[%s191 + $0x6c0] sm:$0xff] %v1447
        %1704 = vst [vmem:[%s191 + $0x6c8] sm:$0xff] %v1448
        %1705 = vst [vmem:[%s191 + $0x6d0] sm:$0xff] %v1449
        %1706 = vst [vmem:[%s191 + $0x6d8] sm:$0xff] %v1450
        %1707 = vst [vmem:[%s191 + $0x6e0] sm:$0xff] %v1451
        %1708 = vst [vmem:[%s191 + $0x6e8] sm:$0xff] %v1452
        %1709 = vst [vmem:[%s191 + $0x6f0] sm:$0xff] %v1453
        %1710 = vst [vmem:[%s191 + $0x6f8] sm:$0xff] %v1454
        %1711 = vst [vmem:[%s191 + $0x700] sm:$0xff] %v1455
        %1712 = vst [vmem:[%s191 + $0x708] sm:$0xff] %v1456
        %1713 = vst [vmem:[%s191 + $0x710] sm:$0xff] %v1457
        %1714 = vst [vmem:[%s191 + $0x718] sm:$0xff] %v1458
        %1715 = vst [vmem:[%s191 + $0x720] sm:$0xff] %v1459
        %1716 = vst [vmem:[%s191 + $0x728] sm:$0xff] %v1460
        %1717 = vst [vmem:[%s191 + $0x730] sm:$0xff] %v1461
        %1718 = vst [vmem:[%s191 + $0x738] sm:$0xff] %v1462
        %1719 = vst [vmem:[%s191 + $0x740] sm:$0xff] %v1463
        %1720 = vst [vmem:[%s191 + $0x748] sm:$0xff] %v1464
        %1721 = vst [vmem:[%s191 + $0x750] sm:$0xff] %v1465
        %1722 = vst [vmem:[%s191 + $0x758] sm:$0xff] %v1466
        %1723 = vst [vmem:[%s191 + $0x760] sm:$0xff] %v1467
        %1724 = vst [vmem:[%s191 + $0x768] sm:$0xff] %v1468
        %1725 = vst [vmem:[%s191 + $0x770] sm:$0xff] %v1469
        %1726 = vst [vmem:[%s191 + $0x778] sm:$0xff] %v1470
        %1727 = vst [vmem:[%s191 + $0x780] sm:$0xff] %v1471
        %1728 = vst [vmem:[%s191 + $0x788] sm:$0xff] %v1472
        %1729 = vst [vmem:[%s191 + $0x790] sm:$0xff] %v1473
        %1730 = vst [vmem:[%s191 + $0x798] sm:$0xff] %v1474
        %1731 = vst [vmem:[%s191 + $0x7a0] sm:$0xff] %v1475
        %1732 = vst [vmem:[%s191 + $0x7a8] sm:$0xff] %v1476
        %1733 = vst [vmem:[%s191 + $0x7b0] sm:$0xff] %v1477
        %1734 = vst [vmem:[%s191 + $0x7b8] sm:$0xff] %v1478
        %1735 = vst [vmem:[%s191 + $0x7c0] sm:$0xff] %v1479
        %1736 = vst [vmem:[%s191 + $0x7c8] sm:$0xff] %v1480
        %1737 = vst [vmem:[%s191 + $0x7d0] sm:$0xff] %v1481
        %1738 = vst [vmem:[%s191 + $0x7d8] sm:$0xff] %v1482
        %1739 = vst [vmem:[%s191 + $0x7e0] sm:$0xff] %v1483
        %1740 = vst [vmem:[%s191 + $0x7e8] sm:$0xff] %v1484
        %1741 = vst [vmem:[%s191 + $0x7f0] sm:$0xff] %v1485
        %1742 = vst [vmem:[%s191 + $0x7f8] sm:$0xff] %v1486
        %s1743 = sand.u32 %s115, 1
        %s1744 = scalar_lea.sflag [#allocation3], %s1743
        %s1745 = sand.u32 %s115, 1
        %s1746 = smul.addr %s1745, 2048
        %s1747 = scalar_lea.vmem [#allocation2], %s1746
        // Predicated region
        $region37: #{lu_conv_forward.3} parent=35 // pred_check
          %p1748 = pneg %p125
        $region38: #{lu_conv_forward.3} parent=35 // pred_check_branch
          %1750 = sbr.rel (%p1748) target = $region40
        $region39: #{lu_conv_forward.3} parent=35 // pred_region
          %s1751 = smul.u32 256, %s18
          %1753 = vsyncadd %s1744, 0
          %s1754 = smul.addr %s1751, 8
          %s1755 = scalar_lea.hbm %s4, %s1754
          %s1756 = sshll.u32 %s1747, 4
          %s1757 = int_to_ptr.vmem [resolvable:$true] %s1756
          %s1758 = sshll.u32 %s1755, 4
          %s1759 = int_to_ptr.hbm [resolvable:$true] %s1758
          %1764 = dma.vmem_to_hbm [thread:$0]  %s1757, 32768, %s1759, %s1744, 128, 128, 8
        $region40: #{lu_conv_forward.3} parent=35 // pred_fallthru
          _
      $region36: #{lu_conv_forward.3} parent=5 // pred_fallthru
        _
      %p1765 = scmp.le.s32.totalorder 2, %s13
      // Predicated region
      $region41: #{lu_conv_forward.3} parent=5 // pred_check
        %p1766 = pneg %p1765
      $region42: #{lu_conv_forward.3} parent=5 // pred_check_branch
        %1768 = sbr.rel (%p1766) target = $region44
      $region43: #{lu_conv_forward.3} parent=5 // pred_region
        %s1769 = ssub.s32 %s13, 2
        // Predicated region
        $region45: #{lu_conv_forward.3} parent=43 // pred_check
          %p1770 = pneg %p131
        $region46: #{lu_conv_forward.3} parent=43 // pred_check_branch
          %1772 = sbr.rel (%p1770) target = $region48
        $region47: #{lu_conv_forward.3} parent=43 // pred_region
          %s1773 = sand.u32 %s116, 1
          %s1774 = scalar_lea.sflag [#allocation3], %s1773
          %s1775 = sand.u32 %s116, 1
          %s1776 = smul.addr %s1775, 2048
          %s1777 = scalar_lea.vmem [#allocation2], %s1776
          %1779 = dma.done %s1774, 32768
        $region48: #{lu_conv_forward.3} parent=43 // pred_fallthru
          _
      $region44: #{lu_conv_forward.3} parent=5 // pred_fallthru
        _
    $region6: #{lu_conv_forward.3} parent=1 // loop_footer
      %s17 = sadd.s32 1, %s13
    $region7: #{lu_conv_forward.3} parent=1 // loop_footer_branch
      %12 = sbr.rel target = $region3
    $region8: #{lu_conv_forward.3} parent=1 // loop_exit
      _
    %1780 = vsyncpa [#allocation3], 1
    %s1781 = scalar_lea.sflag [#allocation3], 1
    %1782 = vsyncpa %s1781, 1

</llo_original>
